<compile_context>
chip_gen: v5e
topology: v5e:2x2
jax: 0.10.0
libtpu: 0.0.40
codegen_flags: <defaults>
</compile_context>

<pallas_src>
import jax
import jax.numpy as jnp
from jax.experimental import pallas as pl
from jax.experimental.pallas import tpu as pltpu


# --------------------------------------------------------------------------
# Pallas kernel 1: fused conv (as matmul) + 2x2 max-pool + bias + ReLU.
#   a_ref : (4, M_blk, Kp)  bf16   im2col patches, one leading slot per pool
#                                   offset (di, dj) in {0,1}^2
#   w_ref : (Kp, N)         bf16   conv weight in matmul form
#   b_ref : (1, N)          f32    conv bias
#   o_ref : (M_blk, N)      f32    pooled + ReLU'd activations (NHWC rows)
# --------------------------------------------------------------------------
def conv_pool_relu_kernel(a_ref, w_ref, b_ref, o_ref):
    w = w_ref[...]
    r = jnp.dot(a_ref[0], w, preferred_element_type=jnp.float32)
    for q in range(1, a_ref.shape[0]):
        r = jnp.maximum(r, jnp.dot(a_ref[q], w,
                                   preferred_element_type=jnp.float32))
    r = jnp.maximum(r + b_ref[...], 0.0)          # bias commutes with max
    o_ref[...] = r.astype(o_ref.dtype)


def conv_pool_relu(a4, w, b, *, m_tiles=1):
    Q, M, K = a4.shape
    N = w.shape[1]
    # pad the contraction dim to a multiple of 128 (lane-dense A tiles,
    # sublane-aligned W tiles); zero padding is a no-op for the matmul.
    Kp = ((K + 127) // 128) * 128
    a4 = _pad_axis(a4.astype(jnp.bfloat16), -1, Kp)
    wp = _pad_axis(w.astype(jnp.bfloat16), 0, Kp)

    assert M % m_tiles == 0
    bm = M // m_tiles
    assert bm == M or bm % 8 == 0

    return pl.pallas_call(
        conv_pool_relu_kernel,
        out_shape=jax.ShapeDtypeStruct((M, N), jnp.float32),
        grid=(m_tiles,),
        in_specs=[
            pl.BlockSpec((Q, bm, Kp), lambda i: (0, i, 0)),
            pl.BlockSpec((Kp, N), lambda i: (0, 0)),
            pl.BlockSpec((1, N), lambda i: (0, 0)),
        ],
        out_specs=pl.BlockSpec((bm, N), lambda i: (i, 0)),
        compiler_params=pltpu.CompilerParams(
            dimension_semantics=("parallel",)),     # megacore on v7x
    )(a4, wp, b.reshape(1, N).astype(jnp.float32))


# --------------------------------------------------------------------------
# Pallas kernel 2: fused classifier head
#   fc1 (320->50) + ReLU + fc2 (50->10) + LogSoftmax(dim=1)
# Intermediates never leave VMEM.
# --------------------------------------------------------------------------
def fc_head_kernel(x_ref, w1_ref, b1_ref, w2_ref, b2_ref, o_ref):
    h = jnp.dot(x_ref[...], w1_ref[...],
                preferred_element_type=jnp.float32) + b1_ref[...]
    h = jnp.maximum(h, 0.0)
    z = jnp.dot(h.astype(w2_ref.dtype), w2_ref[...],
                preferred_element_type=jnp.float32) + b2_ref[...]
    # numerically stable log-softmax over the class (lane) axis
    m = jnp.max(z, axis=-1, keepdims=True)
    lse = m + jnp.log(jnp.sum(jnp.exp(z - m), axis=-1, keepdims=True))
    o_ref[...] = (z - lse).astype(o_ref.dtype)


def fc_head(x, w1, b1, w2, b2):
    B, K1 = x.shape
    H = w1.shape[1]
    N = w2.shape[1]
    return pl.pallas_call(
        fc_head_kernel,
        out_shape=jax.ShapeDtypeStruct((B, N), jnp.float32),
        grid=(1,),
        in_specs=[
            pl.BlockSpec((B, K1), lambda i: (0, 0)),
            pl.BlockSpec((K1, H), lambda i: (0, 0)),
            pl.BlockSpec((1, H), lambda i: (0, 0)),
            pl.BlockSpec((H, N), lambda i: (0, 0)),
            pl.BlockSpec((1, N), lambda i: (0, 0)),
        ],
        out_specs=pl.BlockSpec((B, N), lambda i: (0, 0)),
        compiler_params=pltpu.CompilerParams(
            dimension_semantics=("arbitrary",)),
    )(x.astype(jnp.bfloat16), w1.astype(jnp.bfloat16),
      b1.reshape(1, H).astype(jnp.float32),
      w2.astype(jnp.bfloat16), b2.reshape(1, N).astype(jnp.float32))


# --------------------------------------------------------------------------
# Glue: im2col for "conv(k, stride 1) followed by max-pool(p, p)".
# Produces one im2col matrix per pool offset so the pool can be fused into
# the conv kernel as an elementwise max of matmul results.
#   x NHWC (B, H, W, C)  ->  (p*p, B*Hp*Wp, k*k*C), K ordered (kh, kw, cin)
# --------------------------------------------------------------------------
def _pad_axis(x, axis, target):
    size = x.shape[axis]
    if size == target:
        return x
    pads = [(0, 0)] * x.ndim
    pads[axis % x.ndim] = (0, target - size)
    return jnp.pad(x, pads)


def im2col_conv_pool(x, k, pool):
    B, H, W, C = x.shape
    Ho, Wo = H - k + 1, W - k + 1
    Hp, Wp = Ho // pool, Wo // pool
    blocks = []
    for di in range(pool):
        for dj in range(pool):
            cols = []
            for ki in range(k):
                for kj in range(k):
                    cols.append(x[:, di + ki: di + ki + pool * Hp: pool,
                                     dj + kj: dj + kj + pool * Wp: pool, :])
            patch = jnp.stack(cols, axis=3)              # (B, Hp, Wp, k*k, C)
            blocks.append(patch.reshape(B * Hp * Wp, k * k * C))
    return jnp.stack(blocks, axis=0), Hp, Wp             # (p*p, M, K)


# --------------------------------------------------------------------------
# Full MNISTNetNoBN forward.
#   x: (B, 1, 28, 28) NCHW  ->  log-probabilities (B, 10)
# --------------------------------------------------------------------------
def mnist_net_forward(params, x):
    B = x.shape[0]
    xh = jnp.transpose(x, (0, 2, 3, 1))                  # NHWC (B, 28, 28, 1)

    # conv1 (1->10, 5x5) + maxpool 2x2 + ReLU
    a1, hp1, wp1 = im2col_conv_pool(xh, k=5, pool=2)     # (4, B*144, 25)
    h1 = conv_pool_relu(a1, params["conv1_w"], params["conv1_b"], m_tiles=2)
    h1 = h1.reshape(B, hp1, wp1, 10)                     # NHWC (B, 12, 12, 10)

    # conv2 (10->20, 5x5) + maxpool 2x2 + ReLU
    a2, hp2, wp2 = im2col_conv_pool(h1, k=5, pool=2)     # (4, B*16, 250)
    h2 = conv_pool_relu(a2, params["conv2_w"], params["conv2_b"], m_tiles=1)
    h2 = h2.reshape(B, hp2, wp2, 20)                     # NHWC (B, 4, 4, 20)

    # flatten in torch's (C, h, w) order to match x.view(-1, 320)
    flat = jnp.transpose(h2, (0, 3, 1, 2)).reshape(B, 20 * hp2 * wp2)

    # fc1 + ReLU + fc2 + LogSoftmax (single fused kernel)
    return fc_head(flat, params["fc1_w"], params["fc1_b"],
                   params["fc2_w"], params["fc2_b"])


# --------------------------------------------------------------------------
# Deterministic parameter init (xavier-normal-like for conv/fc weights, zero
# conv biases, small fc biases -- mirrors _initialize_weights()).
# Weights are stored directly in matmul form:
#   conv: torch (Cout, Cin, kh, kw) -> transpose(kh, kw, Cin, Cout).reshape(K, Cout)
#   fc1 : torch (50, 320).T with K ordered (C, h, w)   (matches view(-1,320))
# --------------------------------------------------------------------------
def init_params(key):
    ks = jax.random.split(key, 6)
    f32 = jnp.float32

    def xavier(k, shape):
        fan_in, fan_out = shape
        return jax.random.normal(k, shape, f32) * jnp.sqrt(2.0 / (fan_in + fan_out))

    return {
        "conv1_w": xavier(ks[0], (5 * 5 * 1, 10)),
        "conv1_b": jnp.zeros((10,), f32),
        "conv2_w": xavier(ks[1], (5 * 5 * 10, 20)),
        "conv2_b": jnp.zeros((20,), f32),
        "fc1_w": xavier(ks[2], (320, 50)),
        "fc1_b": jax.random.normal(ks[3], (50,), f32) * 0.01,
        "fc2_w": xavier(ks[4], (50, 10)),
        "fc2_b": jax.random.normal(ks[5], (10,), f32) * 0.01,
    }


if __name__ == "__main__":
    key = jax.random.PRNGKey(0)
    k_x, k_p = jax.random.split(key)
    x = jax.random.normal(k_x, (2, 1, 28, 28), jnp.float32)   # MNIST-shaped input
    params = init_params(k_p)

    fwd = jax.jit(mnist_net_forward)
    logp = fwd(params, x)
    jax.block_until_ready(logp)

    assert logp.shape == (2, 10)
    assert bool(jnp.all(jnp.isfinite(logp)))
    # log-softmax rows must exponentiate-sum to ~1
    row_sums = jnp.sum(jnp.exp(logp), axis=1)
    assert bool(jnp.all(jnp.abs(row_sums - 1.0) < 1e-2))
    print("KERNEL_OK")
</pallas_src>

<mosaic_0001>
module attributes {stable_mosaic.version = 11 : i64} {
  func.func @conv_pool_relu_kernel(%arg0: i32, %arg1: memref<4x144x128xbf16, #tpu.memory_space<vmem>>, %arg2: memref<128x10xbf16, #tpu.memory_space<vmem>>, %arg3: memref<1x10xf32, #tpu.memory_space<vmem>>, %arg4: memref<144x10xf32, #tpu.memory_space<vmem>>) attributes {dimension_semantics = [#tpu.dimension_semantics<parallel>], iteration_bounds = array<i64: 2>, scalar_prefetch = 0 : i64, scratch_operands = 0 : i64, tpu.core_type = #tpu.core_type<tc>, window_params = [{transform_indices = @transform_0, window_bounds = array<i64: 4, 144, 128>}, {pipeline_mode = #tpu.pipeline_mode<synchronous>, transform_indices = @transform_1, window_bounds = array<i64: 128, 10>}, {pipeline_mode = #tpu.pipeline_mode<synchronous>, transform_indices = @transform_2, window_bounds = array<i64: 1, 10>}, {transform_indices = @transform_3, window_bounds = array<i64: 144, 10>}]} {
    %c0 = arith.constant 0 : index
    %c0_0 = arith.constant 0 : index
    %0 = vector.load %arg2[%c0, %c0_0] : memref<128x10xbf16, #tpu.memory_space<vmem>>, vector<128x10xbf16>
    %c0_1 = arith.constant 0 : index
    %c0_2 = arith.constant 0 : index
    %c0_3 = arith.constant 0 : index
    %1 = vector.load %arg1[%c0_1, %c0_2, %c0_3] : memref<4x144x128xbf16, #tpu.memory_space<vmem>>, vector<1x144x128xbf16>
    %2 = vector.shape_cast %1 : vector<1x144x128xbf16> to vector<144x128xbf16>
    %cst = arith.constant dense<0.000000e+00> : vector<144x10xf32>
    %3 = tpu.matmul %2, %0, %cst {dimension_numbers = #tpu.dot_dimension_numbers<[1], [0], [0], [1], [0, 0, 1, 1], [], []>} : vector<144x128xbf16>, vector<128x10xbf16>, vector<144x10xf32> -> vector<144x10xf32>
    %c1 = arith.constant 1 : index
    %c0_4 = arith.constant 0 : index
    %c0_5 = arith.constant 0 : index
    %4 = vector.load %arg1[%c1, %c0_4, %c0_5] : memref<4x144x128xbf16, #tpu.memory_space<vmem>>, vector<1x144x128xbf16>
    %5 = vector.shape_cast %4 : vector<1x144x128xbf16> to vector<144x128xbf16>
    %cst_6 = arith.constant dense<0.000000e+00> : vector<144x10xf32>
    %6 = tpu.matmul %5, %0, %cst_6 {dimension_numbers = #tpu.dot_dimension_numbers<[1], [0], [0], [1], [0, 0, 1, 1], [], []>} : vector<144x128xbf16>, vector<128x10xbf16>, vector<144x10xf32> -> vector<144x10xf32>
    %7 = arith.maximumf %3, %6 : vector<144x10xf32>
    %c2 = arith.constant 2 : index
    %c0_7 = arith.constant 0 : index
    %c0_8 = arith.constant 0 : index
    %8 = vector.load %arg1[%c2, %c0_7, %c0_8] : memref<4x144x128xbf16, #tpu.memory_space<vmem>>, vector<1x144x128xbf16>
    %9 = vector.shape_cast %8 : vector<1x144x128xbf16> to vector<144x128xbf16>
    %cst_9 = arith.constant dense<0.000000e+00> : vector<144x10xf32>
    %10 = tpu.matmul %9, %0, %cst_9 {dimension_numbers = #tpu.dot_dimension_numbers<[1], [0], [0], [1], [0, 0, 1, 1], [], []>} : vector<144x128xbf16>, vector<128x10xbf16>, vector<144x10xf32> -> vector<144x10xf32>
    %11 = arith.maximumf %7, %10 : vector<144x10xf32>
    %c3 = arith.constant 3 : index
    %c0_10 = arith.constant 0 : index
    %c0_11 = arith.constant 0 : index
    %12 = vector.load %arg1[%c3, %c0_10, %c0_11] : memref<4x144x128xbf16, #tpu.memory_space<vmem>>, vector<1x144x128xbf16>
    %13 = vector.shape_cast %12 : vector<1x144x128xbf16> to vector<144x128xbf16>
    %cst_12 = arith.constant dense<0.000000e+00> : vector<144x10xf32>
    %14 = tpu.matmul %13, %0, %cst_12 {dimension_numbers = #tpu.dot_dimension_numbers<[1], [0], [0], [1], [0, 0, 1, 1], [], []>} : vector<144x128xbf16>, vector<128x10xbf16>, vector<144x10xf32> -> vector<144x10xf32>
    %15 = arith.maximumf %11, %14 : vector<144x10xf32>
    %c0_13 = arith.constant 0 : index
    %c0_14 = arith.constant 0 : index
    %16 = vector.load %arg3[%c0_13, %c0_14] : memref<1x10xf32, #tpu.memory_space<vmem>>, vector<1x10xf32>
    %17 = vector.broadcast %16 : vector<1x10xf32> to vector<144x10xf32>
    %18 = arith.addf %15, %17 : vector<144x10xf32>
    %cst_15 = arith.constant 0.000000e+00 : f32
    %19 = vector.broadcast %cst_15 : f32 to vector<144x10xf32>
    %20 = arith.maximumf %18, %19 : vector<144x10xf32>
    %c0_16 = arith.constant 0 : index
    %c0_17 = arith.constant 0 : index
    %21 = vector.load %arg4[%c0_16, %c0_17] : memref<144x10xf32, #tpu.memory_space<vmem>>, vector<144x10xf32>
    tpu.vector_store %arg4[%c0_16, %c0_17], %20 {strides = array<i32>} : memref<144x10xf32, #tpu.memory_space<vmem>>, vector<144x10xf32>,
    return
  }
  func.func @transform_0(%arg0: i32) -> (i32, i32, i32) {
    %c0_i32 = arith.constant 0 : i32
    %c0_i32_0 = arith.constant 0 : i32
    %c0_i32_1 = arith.constant 0 : i32
    return %c0_i32, %arg0, %c0_i32_0 : i32, i32, i32
  }
  func.func @transform_1(%arg0: i32) -> (i32, i32) {
    %c0_i32 = arith.constant 0 : i32
    %c0_i32_0 = arith.constant 0 : i32
    %c0_i32_1 = arith.constant 0 : i32
    return %c0_i32, %c0_i32_0 : i32, i32
  }
  func.func @transform_2(%arg0: i32) -> (i32, i32) {
    %c0_i32 = arith.constant 0 : i32
    %c0_i32_0 = arith.constant 0 : i32
    %c0_i32_1 = arith.constant 0 : i32
    return %c0_i32, %c0_i32_0 : i32, i32
  }
  func.func @transform_3(%arg0: i32) -> (i32, i32) {
    %c0_i32 = arith.constant 0 : i32
    %c0_i32_0 = arith.constant 0 : i32
    return %arg0, %c0_i32 : i32, i32
  }
}

module attributes {stable_mosaic.version = 11 : i64} {
  func.func @conv_pool_relu_kernel(%arg0: i32, %arg1: memref<4x32x256xbf16, #tpu.memory_space<vmem>>, %arg2: memref<256x20xbf16, #tpu.memory_space<vmem>>, %arg3: memref<1x20xf32, #tpu.memory_space<vmem>>, %arg4: memref<32x20xf32, #tpu.memory_space<vmem>>) attributes {dimension_semantics = [#tpu.dimension_semantics<parallel>], iteration_bounds = array<i64: 1>, scalar_prefetch = 0 : i64, scratch_operands = 0 : i64, tpu.core_type = #tpu.core_type<tc>, window_params = [{transform_indices = @transform_0, window_bounds = array<i64: 4, 32, 256>}, {pipeline_mode = #tpu.pipeline_mode<synchronous>, transform_indices = @transform_1, window_bounds = array<i64: 256, 20>}, {pipeline_mode = #tpu.pipeline_mode<synchronous>, transform_indices = @transform_2, window_bounds = array<i64: 1, 20>}, {transform_indices = @transform_3, window_bounds = array<i64: 32, 20>}]} {
    %c0 = arith.constant 0 : index
    %c0_0 = arith.constant 0 : index
    %0 = vector.load %arg2[%c0, %c0_0] : memref<256x20xbf16, #tpu.memory_space<vmem>>, vector<256x20xbf16>
    %c0_1 = arith.constant 0 : index
    %c0_2 = arith.constant 0 : index
    %c0_3 = arith.constant 0 : index
    %1 = vector.load %arg1[%c0_1, %c0_2, %c0_3] : memref<4x32x256xbf16, #tpu.memory_space<vmem>>, vector<1x32x256xbf16>
    %2 = vector.shape_cast %1 : vector<1x32x256xbf16> to vector<32x256xbf16>
    %cst = arith.constant dense<0.000000e+00> : vector<32x20xf32>
    %3 = tpu.matmul %2, %0, %cst {dimension_numbers = #tpu.dot_dimension_numbers<[1], [0], [0], [1], [0, 0, 1, 1], [], []>} : vector<32x256xbf16>, vector<256x20xbf16>, vector<32x20xf32> -> vector<32x20xf32>
    %c1 = arith.constant 1 : index
    %c0_4 = arith.constant 0 : index
    %c0_5 = arith.constant 0 : index
    %4 = vector.load %arg1[%c1, %c0_4, %c0_5] : memref<4x32x256xbf16, #tpu.memory_space<vmem>>, vector<1x32x256xbf16>
    %5 = vector.shape_cast %4 : vector<1x32x256xbf16> to vector<32x256xbf16>
    %cst_6 = arith.constant dense<0.000000e+00> : vector<32x20xf32>
    %6 = tpu.matmul %5, %0, %cst_6 {dimension_numbers = #tpu.dot_dimension_numbers<[1], [0], [0], [1], [0, 0, 1, 1], [], []>} : vector<32x256xbf16>, vector<256x20xbf16>, vector<32x20xf32> -> vector<32x20xf32>
    %7 = arith.maximumf %3, %6 : vector<32x20xf32>
    %c2 = arith.constant 2 : index
    %c0_7 = arith.constant 0 : index
    %c0_8 = arith.constant 0 : index
    %8 = vector.load %arg1[%c2, %c0_7, %c0_8] : memref<4x32x256xbf16, #tpu.memory_space<vmem>>, vector<1x32x256xbf16>
    %9 = vector.shape_cast %8 : vector<1x32x256xbf16> to vector<32x256xbf16>
    %cst_9 = arith.constant dense<0.000000e+00> : vector<32x20xf32>
    %10 = tpu.matmul %9, %0, %cst_9 {dimension_numbers = #tpu.dot_dimension_numbers<[1], [0], [0], [1], [0, 0, 1, 1], [], []>} : vector<32x256xbf16>, vector<256x20xbf16>, vector<32x20xf32> -> vector<32x20xf32>
    %11 = arith.maximumf %7, %10 : vector<32x20xf32>
    %c3 = arith.constant 3 : index
    %c0_10 = arith.constant 0 : index
    %c0_11 = arith.constant 0 : index
    %12 = vector.load %arg1[%c3, %c0_10, %c0_11] : memref<4x32x256xbf16, #tpu.memory_space<vmem>>, vector<1x32x256xbf16>
    %13 = vector.shape_cast %12 : vector<1x32x256xbf16> to vector<32x256xbf16>
    %cst_12 = arith.constant dense<0.000000e+00> : vector<32x20xf32>
    %14 = tpu.matmul %13, %0, %cst_12 {dimension_numbers = #tpu.dot_dimension_numbers<[1], [0], [0], [1], [0, 0, 1, 1], [], []>} : vector<32x256xbf16>, vector<256x20xbf16>, vector<32x20xf32> -> vector<32x20xf32>
    %15 = arith.maximumf %11, %14 : vector<32x20xf32>
    %c0_13 = arith.constant 0 : index
    %c0_14 = arith.constant 0 : index
    %16 = vector.load %arg3[%c0_13, %c0_14] : memref<1x20xf32, #tpu.memory_space<vmem>>, vector<1x20xf32>
    %17 = vector.broadcast %16 : vector<1x20xf32> to vector<32x20xf32>
    %18 = arith.addf %15, %17 : vector<32x20xf32>
    %cst_15 = arith.constant 0.000000e+00 : f32
    %19 = vector.broadcast %cst_15 : f32 to vector<32x20xf32>
    %20 = arith.maximumf %18, %19 : vector<32x20xf32>
    %c0_16 = arith.constant 0 : index
    %c0_17 = arith.constant 0 : index
    %21 = vector.load %arg4[%c0_16, %c0_17] : memref<32x20xf32, #tpu.memory_space<vmem>>, vector<32x20xf32>
    tpu.vector_store %arg4[%c0_16, %c0_17], %20 {strides = array<i32>} : memref<32x20xf32, #tpu.memory_space<vmem>>, vector<32x20xf32>,
    return
  }
  func.func @transform_0(%arg0: i32) -> (i32, i32, i32) {
    %c0_i32 = arith.constant 0 : i32
    %c0_i32_0 = arith.constant 0 : i32
    %c0_i32_1 = arith.constant 0 : i32
    return %c0_i32, %arg0, %c0_i32_0 : i32, i32, i32
  }
  func.func @transform_1(%arg0: i32) -> (i32, i32) {
    %c0_i32 = arith.constant 0 : i32
    %c0_i32_0 = arith.constant 0 : i32
    %c0_i32_1 = arith.constant 0 : i32
    return %c0_i32, %c0_i32_0 : i32, i32
  }
  func.func @transform_2(%arg0: i32) -> (i32, i32) {
    %c0_i32 = arith.constant 0 : i32
    %c0_i32_0 = arith.constant 0 : i32
    %c0_i32_1 = arith.constant 0 : i32
    return %c0_i32, %c0_i32_0 : i32, i32
  }
  func.func @transform_3(%arg0: i32) -> (i32, i32) {
    %c0_i32 = arith.constant 0 : i32
    %c0_i32_0 = arith.constant 0 : i32
    return %arg0, %c0_i32 : i32, i32
  }
}

module attributes {stable_mosaic.version = 11 : i64} {
  func.func @fc_head_kernel(%arg0: i32, %arg1: memref<2x320xbf16, #tpu.memory_space<vmem>>, %arg2: memref<320x50xbf16, #tpu.memory_space<vmem>>, %arg3: memref<1x50xf32, #tpu.memory_space<vmem>>, %arg4: memref<50x10xbf16, #tpu.memory_space<vmem>>, %arg5: memref<1x10xf32, #tpu.memory_space<vmem>>, %arg6: memref<2x10xf32, #tpu.memory_space<vmem>>) attributes {dimension_semantics = [#tpu.dimension_semantics<arbitrary>], iteration_bounds = array<i64: 1>, scalar_prefetch = 0 : i64, scratch_operands = 0 : i64, tpu.core_type = #tpu.core_type<tc>, window_params = [{pipeline_mode = #tpu.pipeline_mode<synchronous>, transform_indices = @transform_0, window_bounds = array<i64: 2, 320>}, {pipeline_mode = #tpu.pipeline_mode<synchronous>, transform_indices = @transform_1, window_bounds = array<i64: 320, 50>}, {pipeline_mode = #tpu.pipeline_mode<synchronous>, transform_indices = @transform_2, window_bounds = array<i64: 1, 50>}, {pipeline_mode = #tpu.pipeline_mode<synchronous>, transform_indices = @transform_3, window_bounds = array<i64: 50, 10>}, {pipeline_mode = #tpu.pipeline_mode<synchronous>, transform_indices = @transform_4, window_bounds = array<i64: 1, 10>}, {pipeline_mode = #tpu.pipeline_mode<synchronous>, transform_indices = @transform_5, window_bounds = array<i64: 2, 10>}]} {
    %c0 = arith.constant 0 : index
    %c0_0 = arith.constant 0 : index
    %0 = vector.load %arg1[%c0, %c0_0] : memref<2x320xbf16, #tpu.memory_space<vmem>>, vector<2x320xbf16>
    %c0_1 = arith.constant 0 : index
    %c0_2 = arith.constant 0 : index
    %1 = vector.load %arg2[%c0_1, %c0_2] : memref<320x50xbf16, #tpu.memory_space<vmem>>, vector<320x50xbf16>
    %cst = arith.constant dense<0.000000e+00> : vector<2x50xf32>
    %2 = tpu.matmul %0, %1, %cst {dimension_numbers = #tpu.dot_dimension_numbers<[1], [0], [0], [1], [0, 0, 1, 1], [], []>} : vector<2x320xbf16>, vector<320x50xbf16>, vector<2x50xf32> -> vector<2x50xf32>
    %c0_3 = arith.constant 0 : index
    %c0_4 = arith.constant 0 : index
    %3 = vector.load %arg3[%c0_3, %c0_4] : memref<1x50xf32, #tpu.memory_space<vmem>>, vector<1x50xf32>
    %4 = vector.broadcast %3 : vector<1x50xf32> to vector<2x50xf32>
    %5 = arith.addf %2, %4 : vector<2x50xf32>
    %cst_5 = arith.constant 0.000000e+00 : f32
    %6 = vector.broadcast %cst_5 : f32 to vector<2x50xf32>
    %7 = arith.maximumf %5, %6 : vector<2x50xf32>
    %8 = arith.truncf %7 : vector<2x50xf32> to vector<2x50xbf16>
    %c0_6 = arith.constant 0 : index
    %c0_7 = arith.constant 0 : index
    %9 = vector.load %arg4[%c0_6, %c0_7] : memref<50x10xbf16, #tpu.memory_space<vmem>>, vector<50x10xbf16>
    %cst_8 = arith.constant dense<0.000000e+00> : vector<2x10xf32>
    %10 = tpu.matmul %8, %9, %cst_8 {dimension_numbers = #tpu.dot_dimension_numbers<[1], [0], [0], [1], [0, 0, 1, 1], [], []>} : vector<2x50xbf16>, vector<50x10xbf16>, vector<2x10xf32> -> vector<2x10xf32>
    %c0_9 = arith.constant 0 : index
    %c0_10 = arith.constant 0 : index
    %11 = vector.load %arg5[%c0_9, %c0_10] : memref<1x10xf32, #tpu.memory_space<vmem>>, vector<1x10xf32>
    %12 = vector.broadcast %11 : vector<1x10xf32> to vector<2x10xf32>
    %13 = arith.addf %10, %12 : vector<2x10xf32>
    %cst_11 = arith.constant dense<0xFF800000> : vector<2xf32>
    %14 = vector.multi_reduction <maximumf>, %13, %cst_11 [1] : vector<2x10xf32> to vector<2xf32>
    %15 = vector.shape_cast %14 : vector<2xf32> to vector<2x1xf32>
    %16 = vector.broadcast %15 : vector<2x1xf32> to vector<2x10xf32>
    %17 = arith.subf %13, %16 : vector<2x10xf32>
    %18 = math.exp %17 : vector<2x10xf32>
    %cst_12 = arith.constant dense<0.000000e+00> : vector<2xf32>
    %19 = vector.multi_reduction <add>, %18, %cst_12 [1] : vector<2x10xf32> to vector<2xf32>
    %20 = vector.shape_cast %19 : vector<2xf32> to vector<2x1xf32>
    %21 = math.log %20 : vector<2x1xf32>
    %22 = arith.addf %15, %21 : vector<2x1xf32>
    %23 = vector.broadcast %22 : vector<2x1xf32> to vector<2x10xf32>
    %24 = arith.subf %13, %23 : vector<2x10xf32>
    %c0_13 = arith.constant 0 : index
    %c0_14 = arith.constant 0 : index
    %25 = vector.load %arg6[%c0_13, %c0_14] : memref<2x10xf32, #tpu.memory_space<vmem>>, vector<2x10xf32>
    tpu.vector_store %arg6[%c0_13, %c0_14], %24 {strides = array<i32>} : memref<2x10xf32, #tpu.memory_space<vmem>>, vector<2x10xf32>,
    return
  }
  func.func @transform_0(%arg0: i32) -> (i32, i32) {
    %c0_i32 = arith.constant 0 : i32
    %c0_i32_0 = arith.constant 0 : i32
    %c0_i32_1 = arith.constant 0 : i32
    return %c0_i32, %c0_i32_0 : i32, i32
  }
  func.func @transform_1(%arg0: i32) -> (i32, i32) {
    %c0_i32 = arith.constant 0 : i32
    %c0_i32_0 = arith.constant 0 : i32
    %c0_i32_1 = arith.constant 0 : i32
    return %c0_i32, %c0_i32_0 : i32, i32
  }
  func.func @transform_2(%arg0: i32) -> (i32, i32) {
    %c0_i32 = arith.constant 0 : i32
    %c0_i32_0 = arith.constant 0 : i32
    %c0_i32_1 = arith.constant 0 : i32
    return %c0_i32, %c0_i32_0 : i32, i32
  }
  func.func @transform_3(%arg0: i32) -> (i32, i32) {
    %c0_i32 = arith.constant 0 : i32
    %c0_i32_0 = arith.constant 0 : i32
    %c0_i32_1 = arith.constant 0 : i32
    return %c0_i32, %c0_i32_0 : i32, i32
  }
  func.func @transform_4(%arg0: i32) -> (i32, i32) {
    %c0_i32 = arith.constant 0 : i32
    %c0_i32_0 = arith.constant 0 : i32
    %c0_i32_1 = arith.constant 0 : i32
    return %c0_i32, %c0_i32_0 : i32, i32
  }
  func.func @transform_5(%arg0: i32) -> (i32, i32) {
    %c0_i32 = arith.constant 0 : i32
    %c0_i32_0 = arith.constant 0 : i32
    %c0_i32_1 = arith.constant 0 : i32
    return %c0_i32, %c0_i32_0 : i32, i32
  }
}

</mosaic_0001>

<llo_original>
// kernel: mnist_net_forward.3
$region0: #{mnist_net_forward.3}
  #allocation0 [shape = 'u32[]', space=smem, size = 0x4, offset = 0x4, fixed_abs, tag = 'smem constant byte address 0x4 - core index']
  #allocation1 [shape = 'u32[72,128]{1,0:T(1,128)}', space=vmem, size = 0x9000, scoped, tag = 'internal scratch']
  %s0 = inlined_call_operand.vmem [shape: bf16[4,288,128], index: 0, kind: input, shape index: {}]
  %s1 = inlined_call_operand.vmem [shape: bf16[128,10], index: 1, kind: input, shape index: {}]
  %s2 = inlined_call_operand.vmem [shape: f32[1,10], index: 2, kind: input, shape index: {}]
  %s3 = inlined_call_operand.vmem [shape: f32[288,10], index: 3, kind: output, shape index: {}]
  %s4 = sld [smem:[#allocation0]]
  $region86: #{mnist_net_forward.3} parent=0
    _
  %s6 = ssub.s32 1, %s4
  %s7 = scalar_select 0, %s6, %s4
  $region1: #{mnist_net_forward.3} parent=0
    #allocation2 [shape = 'u8[294912]{0}', space=vmem, size = 0x48000, scoped, tag = 'input window, operand 0']
    loop: start=0, step=1, limit=4
    $region2: #{mnist_net_forward.3} parent=1 // loop_pre_header
      _
    $region3: #{mnist_net_forward.3} parent=1 // loop_header
      %s9 = sphi 0, %s13
      %p10 = scmp.ge.s32.totalorder %s9, 4
      %s19 = sphi 0, %s21
      %s22 = sphi 0, %s19
      %s23 = sphi 0, %s22
      %s39 = sphi 0, %s23
      %s43 = sphi 0, %s43
      %s45 = sphi 0, %s43
      %s46 = sphi 0, %s45
      %s60 = sphi 0, %s46
      %s64 = sphi 0, %s64
      %s66 = sphi 0, %s64
      %s67 = sphi 0, %s66
      %s81 = sphi 0, %s67
      %s87 = sphi 0, %s89
      %s90 = sphi 0, %s87
      %s91 = sphi 0, %s90
      %s107 = sphi 0, %s91
    $region4: #{mnist_net_forward.3} parent=1 // loop_header_branch
      %12 = sbr.rel (%p10) target = $region8
    $region5: #{mnist_net_forward.3} parent=1 // loop_body
      %s14 = ssub.s32 %s9, 1
      %s15 = ssub.s32 %s9, 2
      %s16 = sadd.s32 %s9, 1
      %s17 = ssub.s32 %s9, %s16
      %p18 = scmp.eq.s32.totalorder %s17, 0
      %s20 = sadd.s32 %s19, 1
      %s21 = scalar_select %p18, %s19, %s20
      %p24 = pneg %p18
      %p25 = scmp.eq.s32.totalorder %s9, 1
      %p26 = por %p24, %p25
      %p27 = scmp.ne.s32.totalorder %s19, %s22
      %p28 = scmp.eq.s32.totalorder %s9, 0
      %p29 = por %p27, %p28
      %p30 = scmp.ne.s32.totalorder %s19, %s22
      %p31 = scmp.eq.s32.totalorder %s14, 1
      %p32 = por %p30, %p31
      %p33 = scmp.ne.s32.totalorder %s22, %s23
      %p34 = scmp.eq.s32.totalorder %s14, 0
      %p35 = por %p33, %p34
      %p36 = scmp.ne.s32.totalorder %s22, %s23
      %p37 = scmp.eq.s32.totalorder %s15, 1
      %p38 = por %p36, %p37
      %p40 = scmp.ne.s32.totalorder %s23, %s39
      %p41 = scmp.eq.s32.totalorder %s15, 0
      %p42 = por %p40, %p41
      %s44 = sadd.s32 %s43, 1
      %p47 = scmp.eq.s32.totalorder %s9, 1
      %p48 = scmp.ne.s32.totalorder %s43, %s45
      %p49 = scmp.eq.s32.totalorder %s9, 0
      %p50 = por %p48, %p49
      %p51 = scmp.ne.s32.totalorder %s43, %s45
      %p52 = scmp.eq.s32.totalorder %s14, 1
      %p53 = por %p51, %p52
      %p54 = scmp.ne.s32.totalorder %s45, %s46
      %p55 = scmp.eq.s32.totalorder %s14, 0
      %p56 = por %p54, %p55
      %p57 = scmp.ne.s32.totalorder %s45, %s46
      %p58 = scmp.eq.s32.totalorder %s15, 1
      %p59 = por %p57, %p58
      %p61 = scmp.ne.s32.totalorder %s46, %s60
      %p62 = scmp.eq.s32.totalorder %s15, 0
      %p63 = por %p61, %p62
      %s65 = sadd.s32 %s64, 1
      %p68 = scmp.eq.s32.totalorder %s9, 1
      %p69 = scmp.ne.s32.totalorder %s64, %s66
      %p70 = scmp.eq.s32.totalorder %s9, 0
      %p71 = por %p69, %p70
      %p72 = scmp.ne.s32.totalorder %s64, %s66
      %p73 = scmp.eq.s32.totalorder %s14, 1
      %p74 = por %p72, %p73
      %p75 = scmp.ne.s32.totalorder %s66, %s67
      %p76 = scmp.eq.s32.totalorder %s14, 0
      %p77 = por %p75, %p76
      %p78 = scmp.ne.s32.totalorder %s66, %s67
      %p79 = scmp.eq.s32.totalorder %s15, 1
      %p80 = por %p78, %p79
      %p82 = scmp.ne.s32.totalorder %s67, %s81
      %p83 = scmp.eq.s32.totalorder %s15, 0
      %p84 = por %p82, %p83
      %s85 = ssub.s32 %s9, %s16
      %p86 = scmp.eq.s32.totalorder %s85, 0
      %s88 = sadd.s32 %s87, 1
      %s89 = scalar_select %p86, %s87, %s88
      %p92 = pneg %p86
      %p93 = scmp.eq.s32.totalorder %s9, 1
      %p94 = por %p92, %p93
      %p95 = scmp.ne.s32.totalorder %s87, %s90
      %p96 = scmp.eq.s32.totalorder %s9, 0
      %p97 = por %p95, %p96
      %p98 = scmp.ne.s32.totalorder %s87, %s90
      %p99 = scmp.eq.s32.totalorder %s14, 1
      %p100 = por %p98, %p99
      %p101 = scmp.ne.s32.totalorder %s90, %s91
      %p102 = scmp.eq.s32.totalorder %s14, 0
      %p103 = por %p101, %p102
      %p104 = scmp.ne.s32.totalorder %s90, %s91
      %p105 = scmp.eq.s32.totalorder %s15, 1
      %p106 = por %p104, %p105
      %p108 = scmp.ne.s32.totalorder %s91, %s107
      %p109 = scmp.eq.s32.totalorder %s15, 0
      %p110 = por %p108, %p109
      %p111 = scmp.le.s32.totalorder 1, %s9
      %p112 = scmp.lt.s32.totalorder %s9, 3
      %p113 = pnand %p111, %p112
      %p114 = pneg %p113
      // Predicated region
      $region9: #{mnist_net_forward.3} parent=5 // pred_check
        _
      $region10: #{mnist_net_forward.3} parent=5 // pred_check_branch
        %116 = sbr.rel (%p113) target = $region12
      $region11: #{mnist_net_forward.3} parent=5 // pred_region
        %s117 = ssub.s32 %s9, 1
        // Predicated region
        $region13: #{mnist_net_forward.3} parent=11 // pred_check
          %p118 = pneg %p56
        $region14: #{mnist_net_forward.3} parent=11 // pred_check_branch
          %120 = sbr.rel (%p118) target = $region16
        $region15: #{mnist_net_forward.3} parent=11 // pred_region
          _
        $region16: #{mnist_net_forward.3} parent=11 // pred_fallthru
          _
        // Predicated region
        $region17: #{mnist_net_forward.3} parent=11 // pred_check
          %p121 = pneg %p77
        $region18: #{mnist_net_forward.3} parent=11 // pred_check_branch
          %123 = sbr.rel (%p121) target = $region20
        $region19: #{mnist_net_forward.3} parent=11 // pred_region
          _
        $region20: #{mnist_net_forward.3} parent=11 // pred_fallthru
          _
      $region12: #{mnist_net_forward.3} parent=5 // pred_fallthru
        _
      %p124 = scmp.lt.s32.totalorder %s9, 2
      // Predicated region
      $region21: #{mnist_net_forward.3} parent=5 // pred_check
        %p125 = pneg %p124
      $region22: #{mnist_net_forward.3} parent=5 // pred_check_branch
        %127 = sbr.rel (%p125) target = $region24
      $region23: #{mnist_net_forward.3} parent=5 // pred_region
        // Predicated region
        $region25: #{mnist_net_forward.3} parent=23 // pred_check
          %p128 = pneg %p29
        $region26: #{mnist_net_forward.3} parent=23 // pred_check_branch
          %130 = sbr.rel (%p128) target = $region28
        $region27: #{mnist_net_forward.3} parent=23 // pred_region
          %s131 = sand.u32 %s19, 1
          %s132 = sand.u32 %s19, 1
          %s133 = smul.addr %s132, 288
          %s134 = scalar_lea.vmem [#allocation2], %s133
          %s135 = smul.u32 18, %s9
          %s136 = smul.addr %s135, 4
          %s137 = scalar_lea.vmem %s0, %s136
          // Predicated region
          $region29: #{mnist_net_forward.3} parent=27 // pred_check
            _
          $region30: #{mnist_net_forward.3} parent=27 // pred_check_branch
            %139 = sbr.rel (0) target = $region32
          $region31: #{mnist_net_forward.3} parent=27 // pred_region
            // Predicated region
            $region33: #{mnist_net_forward.3} parent=31 // pred_check
              _
            $region34: #{mnist_net_forward.3} parent=31 // pred_check_branch
              %141 = sbr.rel target = $region36
            $region35: #{mnist_net_forward.3} parent=31 // pred_region
              // Predicated region
              $region48: #{mnist_net_forward.3} parent=35 // pred_check
                _
              $region49: #{mnist_net_forward.3} parent=35 // pred_check_branch
                %299 = sbr.rel (0) target = $region51
              $region50: #{mnist_net_forward.3} parent=35 // pred_region
                loop: start=0, step=1, limit=1
                $region52: #{mnist_net_forward.3} parent=50 // loop_pre_header
                  _
                $region53: #{mnist_net_forward.3} parent=50 // loop_header
                  %s301 = sphi 0, %s305
                  %p302 = scmp.ge.s32.totalorder %s301, 1
                  %s306 = sphi %s137, %s137
                  %s307 = sphi %s134, %s134
                $region54: #{mnist_net_forward.3} parent=50 // loop_header_branch
                  %304 = sbr.rel (%p302) target = $region58
                $region55: #{mnist_net_forward.3} parent=50 // loop_body
                  _
                $region56: #{mnist_net_forward.3} parent=50 // loop_footer
                  %s305 = sadd.s32 1, %s301
                $region57: #{mnist_net_forward.3} parent=50 // loop_footer_branch
                  %300 = sbr.rel target = $region53
                $region58: #{mnist_net_forward.3} parent=50 // loop_exit
                  _
                %s309 = ssub.s32 16, 1
                loop: start=0, step=1, limit=1
                $region59: #{mnist_net_forward.3} parent=50 // loop_pre_header
                  _
                $region60: #{mnist_net_forward.3} parent=50 // loop_header
                  %s311 = sphi 0, %s315
                  %p312 = scmp.ge.s32.totalorder %s311, 1
                  %s316 = sphi %s137, %s137
                  %s317 = sphi %s134, %s134
                $region61: #{mnist_net_forward.3} parent=50 // loop_header_branch
                  %314 = sbr.rel (%p312) target = $region65
                $region62: #{mnist_net_forward.3} parent=50 // loop_body
                  %v318 = vld [vmem:[%s316] sm:%s309]
                  %319 = vst [vmem:[%s317] sm:%s309] %v318
                  %v320 = vld [vmem:[%s316 + $0x4] sm:%s309]
                  %321 = vst [vmem:[%s317 + $0x4] sm:%s309] %v320
                  %v322 = vld [vmem:[%s316 + $0x8] sm:%s309]
                  %323 = vst [vmem:[%s317 + $0x8] sm:%s309] %v322
                  %v324 = vld [vmem:[%s316 + $0xc] sm:%s309]
                  %325 = vst [vmem:[%s317 + $0xc] sm:%s309] %v324
                  %v326 = vld [vmem:[%s316 + $0x10] sm:%s309]
                  %327 = vst [vmem:[%s317 + $0x10] sm:%s309] %v326
                  %v328 = vld [vmem:[%s316 + $0x14] sm:%s309]
                  %329 = vst [vmem:[%s317 + $0x14] sm:%s309] %v328
                  %v330 = vld [vmem:[%s316 + $0x18] sm:%s309]
                  %331 = vst [vmem:[%s317 + $0x18] sm:%s309] %v330
                  %v332 = vld [vmem:[%s316 + $0x1c] sm:%s309]
                  %333 = vst [vmem:[%s317 + $0x1c] sm:%s309] %v332
                  %v334 = vld [vmem:[%s316 + $0x20] sm:%s309]
                  %335 = vst [vmem:[%s317 + $0x20] sm:%s309] %v334
                  %v336 = vld [vmem:[%s316 + $0x24] sm:%s309]
                  %337 = vst [vmem:[%s317 + $0x24] sm:%s309] %v336
                  %v338 = vld [vmem:[%s316 + $0x28] sm:%s309]
                  %339 = vst [vmem:[%s317 + $0x28] sm:%s309] %v338
                  %v340 = vld [vmem:[%s316 + $0x2c] sm:%s309]
                  %341 = vst [vmem:[%s317 + $0x2c] sm:%s309] %v340
                  %v342 = vld [vmem:[%s316 + $0x30] sm:%s309]
                  %343 = vst [vmem:[%s317 + $0x30] sm:%s309] %v342
                  %v344 = vld [vmem:[%s316 + $0x34] sm:%s309]
                  %345 = vst [vmem:[%s317 + $0x34] sm:%s309] %v344
                  %v346 = vld [vmem:[%s316 + $0x38] sm:%s309]
                  %347 = vst [vmem:[%s317 + $0x38] sm:%s309] %v346
                  %v348 = vld [vmem:[%s316 + $0x3c] sm:%s309]
                  %349 = vst [vmem:[%s317 + $0x3c] sm:%s309] %v348
                  %v350 = vld [vmem:[%s316 + $0x40] sm:%s309]
                  %351 = vst [vmem:[%s317 + $0x40] sm:%s309] %v350
                  %v352 = vld [vmem:[%s316 + $0x44] sm:%s309]
                  %353 = vst [vmem:[%s317 + $0x44] sm:%s309] %v352
                  %v354 = vld [vmem:[%s316 + $0x90] sm:%s309]
                  %355 = vst [vmem:[%s317 + $0x48] sm:%s309] %v354
                  %v356 = vld [vmem:[%s316 + $0x94] sm:%s309]
                  %357 = vst [vmem:[%s317 + $0x4c] sm:%s309] %v356
                  %v358 = vld [vmem:[%s316 + $0x98] sm:%s309]
                  %359 = vst [vmem:[%s317 + $0x50] sm:%s309] %v358
                  %v360 = vld [vmem:[%s316 + $0x9c] sm:%s309]
                  %361 = vst [vmem:[%s317 + $0x54] sm:%s309] %v360
                  %v362 = vld [vmem:[%s316 + $0xa0] sm:%s309]
                  %363 = vst [vmem:[%s317 + $0x58] sm:%s309] %v362
                  %v364 = vld [vmem:[%s316 + $0xa4] sm:%s309]
                  %365 = vst [vmem:[%s317 + $0x5c] sm:%s309] %v364
                  %v366 = vld [vmem:[%s316 + $0xa8] sm:%s309]
                  %367 = vst [vmem:[%s317 + $0x60] sm:%s309] %v366
                  %v368 = vld [vmem:[%s316 + $0xac] sm:%s309]
                  %369 = vst [vmem:[%s317 + $0x64] sm:%s309] %v368
                  %v370 = vld [vmem:[%s316 + $0xb0] sm:%s309]
                  %371 = vst [vmem:[%s317 + $0x68] sm:%s309] %v370
                  %v372 = vld [vmem:[%s316 + $0xb4] sm:%s309]
                  %373 = vst [vmem:[%s317 + $0x6c] sm:%s309] %v372
                  %v374 = vld [vmem:[%s316 + $0xb8] sm:%s309]
                  %375 = vst [vmem:[%s317 + $0x70] sm:%s309] %v374
                  %v376 = vld [vmem:[%s316 + $0xbc] sm:%s309]
                  %377 = vst [vmem:[%s317 + $0x74] sm:%s309] %v376
                  %v378 = vld [vmem:[%s316 + $0xc0] sm:%s309]
                  %379 = vst [vmem:[%s317 + $0x78] sm:%s309] %v378
                  %v380 = vld [vmem:[%s316 + $0xc4] sm:%s309]
                  %381 = vst [vmem:[%s317 + $0x7c] sm:%s309] %v380
                  %v382 = vld [vmem:[%s316 + $0xc8] sm:%s309]
                  %383 = vst [vmem:[%s317 + $0x80] sm:%s309] %v382
                  %v384 = vld [vmem:[%s316 + $0xcc] sm:%s309]
                  %385 = vst [vmem:[%s317 + $0x84] sm:%s309] %v384
                  %v386 = vld [vmem:[%s316 + $0xd0] sm:%s309]
                  %387 = vst [vmem:[%s317 + $0x88] sm:%s309] %v386
                  %v388 = vld [vmem:[%s316 + $0xd4] sm:%s309]
                  %389 = vst [vmem:[%s317 + $0x8c] sm:%s309] %v388
                  %v390 = vld [vmem:[%s316 + $0x120] sm:%s309]
                  %391 = vst [vmem:[%s317 + $0x90] sm:%s309] %v390
                  %v392 = vld [vmem:[%s316 + $0x124] sm:%s309]
                  %393 = vst [vmem:[%s317 + $0x94] sm:%s309] %v392
                  %v394 = vld [vmem:[%s316 + $0x128] sm:%s309]
                  %395 = vst [vmem:[%s317 + $0x98] sm:%s309] %v394
                  %v396 = vld [vmem:[%s316 + $0x12c] sm:%s309]
                  %397 = vst [vmem:[%s317 + $0x9c] sm:%s309] %v396
                  %v398 = vld [vmem:[%s316 + $0x130] sm:%s309]
                  %399 = vst [vmem:[%s317 + $0xa0] sm:%s309] %v398
                  %v400 = vld [vmem:[%s316 + $0x134] sm:%s309]
                  %401 = vst [vmem:[%s317 + $0xa4] sm:%s309] %v400
                  %v402 = vld [vmem:[%s316 + $0x138] sm:%s309]
                  %403 = vst [vmem:[%s317 + $0xa8] sm:%s309] %v402
                  %v404 = vld [vmem:[%s316 + $0x13c] sm:%s309]
                  %405 = vst [vmem:[%s317 + $0xac] sm:%s309] %v404
                  %v406 = vld [vmem:[%s316 + $0x140] sm:%s309]
                  %407 = vst [vmem:[%s317 + $0xb0] sm:%s309] %v406
                  %v408 = vld [vmem:[%s316 + $0x144] sm:%s309]
                  %409 = vst [vmem:[%s317 + $0xb4] sm:%s309] %v408
                  %v410 = vld [vmem:[%s316 + $0x148] sm:%s309]
                  %411 = vst [vmem:[%s317 + $0xb8] sm:%s309] %v410
                  %v412 = vld [vmem:[%s316 + $0x14c] sm:%s309]
                  %413 = vst [vmem:[%s317 + $0xbc] sm:%s309] %v412
                  %v414 = vld [vmem:[%s316 + $0x150] sm:%s309]
                  %415 = vst [vmem:[%s317 + $0xc0] sm:%s309] %v414
                  %v416 = vld [vmem:[%s316 + $0x154] sm:%s309]
                  %417 = vst [vmem:[%s317 + $0xc4] sm:%s309] %v416
                  %v418 = vld [vmem:[%s316 + $0x158] sm:%s309]
                  %419 = vst [vmem:[%s317 + $0xc8] sm:%s309] %v418
                  %v420 = vld [vmem:[%s316 + $0x15c] sm:%s309]
                  %421 = vst [vmem:[%s317 + $0xcc] sm:%s309] %v420
                  %v422 = vld [vmem:[%s316 + $0x160] sm:%s309]
                  %423 = vst [vmem:[%s317 + $0xd0] sm:%s309] %v422
                  %v424 = vld [vmem:[%s316 + $0x164] sm:%s309]
                  %425 = vst [vmem:[%s317 + $0xd4] sm:%s309] %v424
                  %v426 = vld [vmem:[%s316 + $0x1b0] sm:%s309]
                  %427 = vst [vmem:[%s317 + $0xd8] sm:%s309] %v426
                  %v428 = vld [vmem:[%s316 + $0x1b4] sm:%s309]
                  %429 = vst [vmem:[%s317 + $0xdc] sm:%s309] %v428
                  %v430 = vld [vmem:[%s316 + $0x1b8] sm:%s309]
                  %431 = vst [vmem:[%s317 + $0xe0] sm:%s309] %v430
                  %v432 = vld [vmem:[%s316 + $0x1bc] sm:%s309]
                  %433 = vst [vmem:[%s317 + $0xe4] sm:%s309] %v432
                  %v434 = vld [vmem:[%s316 + $0x1c0] sm:%s309]
                  %435 = vst [vmem:[%s317 + $0xe8] sm:%s309] %v434
                  %v436 = vld [vmem:[%s316 + $0x1c4] sm:%s309]
                  %437 = vst [vmem:[%s317 + $0xec] sm:%s309] %v436
                  %v438 = vld [vmem:[%s316 + $0x1c8] sm:%s309]
                  %439 = vst [vmem:[%s317 + $0xf0] sm:%s309] %v438
                  %v440 = vld [vmem:[%s316 + $0x1cc] sm:%s309]
                  %441 = vst [vmem:[%s317 + $0xf4] sm:%s309] %v440
                  %v442 = vld [vmem:[%s316 + $0x1d0] sm:%s309]
                  %443 = vst [vmem:[%s317 + $0xf8] sm:%s309] %v442
                  %v444 = vld [vmem:[%s316 + $0x1d4] sm:%s309]
                  %445 = vst [vmem:[%s317 + $0xfc] sm:%s309] %v444
                  %v446 = vld [vmem:[%s316 + $0x1d8] sm:%s309]
                  %447 = vst [vmem:[%s317 + $0x100] sm:%s309] %v446
                  %v448 = vld [vmem:[%s316 + $0x1dc] sm:%s309]
                  %449 = vst [vmem:[%s317 + $0x104] sm:%s309] %v448
                  %v450 = vld [vmem:[%s316 + $0x1e0] sm:%s309]
                  %451 = vst [vmem:[%s317 + $0x108] sm:%s309] %v450
                  %v452 = vld [vmem:[%s316 + $0x1e4] sm:%s309]
                  %453 = vst [vmem:[%s317 + $0x10c] sm:%s309] %v452
                  %v454 = vld [vmem:[%s316 + $0x1e8] sm:%s309]
                  %455 = vst [vmem:[%s317 + $0x110] sm:%s309] %v454
                  %v456 = vld [vmem:[%s316 + $0x1ec] sm:%s309]
                  %457 = vst [vmem:[%s317 + $0x114] sm:%s309] %v456
                  %v458 = vld [vmem:[%s316 + $0x1f0] sm:%s309]
                  %459 = vst [vmem:[%s317 + $0x118] sm:%s309] %v458
                  %v460 = vld [vmem:[%s316 + $0x1f4] sm:%s309]
                  %461 = vst [vmem:[%s317 + $0x11c] sm:%s309] %v460
                $region63: #{mnist_net_forward.3} parent=50 // loop_footer
                  %s315 = sadd.s32 1, %s311
                $region64: #{mnist_net_forward.3} parent=50 // loop_footer_branch
                  %310 = sbr.rel target = $region60
                $region65: #{mnist_net_forward.3} parent=50 // loop_exit
                  _
              $region51: #{mnist_net_forward.3} parent=35 // pred_fallthru
                _
            $region36: #{mnist_net_forward.3} parent=31 // pred_fallthru
              _
            // Predicated region
            $region37: #{mnist_net_forward.3} parent=31 // pred_check
              _
            $region38: #{mnist_net_forward.3} parent=31 // pred_check_branch
              %143 = sbr.rel (0) target = $region40
            $region39: #{mnist_net_forward.3} parent=31 // pred_region
              %s145 = ssub.s32 16, 1
              loop: start=0, step=1, limit=1
              $region41: #{mnist_net_forward.3} parent=39 // loop_pre_header
                _
              $region42: #{mnist_net_forward.3} parent=39 // loop_header
                %s147 = sphi 0, %s151
                %p148 = scmp.ge.s32.totalorder %s147, 1
                %s152 = sphi %s137, %s137
                %s153 = sphi %s134, %s134
              $region43: #{mnist_net_forward.3} parent=39 // loop_header_branch
                %150 = sbr.rel (%p148) target = $region47
              $region44: #{mnist_net_forward.3} parent=39 // loop_body
                %v154 = vld [vmem:[%s152] sm:%s145]
                %155 = vst [vmem:[%s153] sm:%s145] %v154
                %v156 = vld [vmem:[%s152 + $0x4] sm:%s145]
                %157 = vst [vmem:[%s153 + $0x4] sm:%s145] %v156
                %v158 = vld [vmem:[%s152 + $0x8] sm:%s145]
                %159 = vst [vmem:[%s153 + $0x8] sm:%s145] %v158
                %v160 = vld [vmem:[%s152 + $0xc] sm:%s145]
                %161 = vst [vmem:[%s153 + $0xc] sm:%s145] %v160
                %v162 = vld [vmem:[%s152 + $0x10] sm:%s145]
                %163 = vst [vmem:[%s153 + $0x10] sm:%s145] %v162
                %v164 = vld [vmem:[%s152 + $0x14] sm:%s145]
                %165 = vst [vmem:[%s153 + $0x14] sm:%s145] %v164
                %v166 = vld [vmem:[%s152 + $0x18] sm:%s145]
                %167 = vst [vmem:[%s153 + $0x18] sm:%s145] %v166
                %v168 = vld [vmem:[%s152 + $0x1c] sm:%s145]
                %169 = vst [vmem:[%s153 + $0x1c] sm:%s145] %v168
                %v170 = vld [vmem:[%s152 + $0x20] sm:%s145]
                %171 = vst [vmem:[%s153 + $0x20] sm:%s145] %v170
                %v172 = vld [vmem:[%s152 + $0x24] sm:%s145]
                %173 = vst [vmem:[%s153 + $0x24] sm:%s145] %v172
                %v174 = vld [vmem:[%s152 + $0x28] sm:%s145]
                %175 = vst [vmem:[%s153 + $0x28] sm:%s145] %v174
                %v176 = vld [vmem:[%s152 + $0x2c] sm:%s145]
                %177 = vst [vmem:[%s153 + $0x2c] sm:%s145] %v176
                %v178 = vld [vmem:[%s152 + $0x30] sm:%s145]
                %179 = vst [vmem:[%s153 + $0x30] sm:%s145] %v178
                %v180 = vld [vmem:[%s152 + $0x34] sm:%s145]
                %181 = vst [vmem:[%s153 + $0x34] sm:%s145] %v180
                %v182 = vld [vmem:[%s152 + $0x38] sm:%s145]
                %183 = vst [vmem:[%s153 + $0x38] sm:%s145] %v182
                %v184 = vld [vmem:[%s152 + $0x3c] sm:%s145]
                %185 = vst [vmem:[%s153 + $0x3c] sm:%s145] %v184
                %v186 = vld [vmem:[%s152 + $0x40] sm:%s145]
                %187 = vst [vmem:[%s153 + $0x40] sm:%s145] %v186
                %v188 = vld [vmem:[%s152 + $0x44] sm:%s145]
                %189 = vst [vmem:[%s153 + $0x44] sm:%s145] %v188
                %v190 = vld [vmem:[%s152 + $0x90] sm:%s145]
                %191 = vst [vmem:[%s153 + $0x48] sm:%s145] %v190
                %v192 = vld [vmem:[%s152 + $0x94] sm:%s145]
                %193 = vst [vmem:[%s153 + $0x4c] sm:%s145] %v192
                %v194 = vld [vmem:[%s152 + $0x98] sm:%s145]
                %195 = vst [vmem:[%s153 + $0x50] sm:%s145] %v194
                %v196 = vld [vmem:[%s152 + $0x9c] sm:%s145]
                %197 = vst [vmem:[%s153 + $0x54] sm:%s145] %v196
                %v198 = vld [vmem:[%s152 + $0xa0] sm:%s145]
                %199 = vst [vmem:[%s153 + $0x58] sm:%s145] %v198
                %v200 = vld [vmem:[%s152 + $0xa4] sm:%s145]
                %201 = vst [vmem:[%s153 + $0x5c] sm:%s145] %v200
                %v202 = vld [vmem:[%s152 + $0xa8] sm:%s145]
                %203 = vst [vmem:[%s153 + $0x60] sm:%s145] %v202
                %v204 = vld [vmem:[%s152 + $0xac] sm:%s145]
                %205 = vst [vmem:[%s153 + $0x64] sm:%s145] %v204
                %v206 = vld [vmem:[%s152 + $0xb0] sm:%s145]
                %207 = vst [vmem:[%s153 + $0x68] sm:%s145] %v206
                %v208 = vld [vmem:[%s152 + $0xb4] sm:%s145]
                %209 = vst [vmem:[%s153 + $0x6c] sm:%s145] %v208
                %v210 = vld [vmem:[%s152 + $0xb8] sm:%s145]
                %211 = vst [vmem:[%s153 + $0x70] sm:%s145] %v210
                %v212 = vld [vmem:[%s152 + $0xbc] sm:%s145]
                %213 = vst [vmem:[%s153 + $0x74] sm:%s145] %v212
                %v214 = vld [vmem:[%s152 + $0xc0] sm:%s145]
                %215 = vst [vmem:[%s153 + $0x78] sm:%s145] %v214
                %v216 = vld [vmem:[%s152 + $0xc4] sm:%s145]
                %217 = vst [vmem:[%s153 + $0x7c] sm:%s145] %v216
                %v218 = vld [vmem:[%s152 + $0xc8] sm:%s145]
                %219 = vst [vmem:[%s153 + $0x80] sm:%s145] %v218
                %v220 = vld [vmem:[%s152 + $0xcc] sm:%s145]
                %221 = vst [vmem:[%s153 + $0x84] sm:%s145] %v220
                %v222 = vld [vmem:[%s152 + $0xd0] sm:%s145]
                %223 = vst [vmem:[%s153 + $0x88] sm:%s145] %v222
                %v224 = vld [vmem:[%s152 + $0xd4] sm:%s145]
                %225 = vst [vmem:[%s153 + $0x8c] sm:%s145] %v224
                %v226 = vld [vmem:[%s152 + $0x120] sm:%s145]
                %227 = vst [vmem:[%s153 + $0x90] sm:%s145] %v226
                %v228 = vld [vmem:[%s152 + $0x124] sm:%s145]
                %229 = vst [vmem:[%s153 + $0x94] sm:%s145] %v228
                %v230 = vld [vmem:[%s152 + $0x128] sm:%s145]
                %231 = vst [vmem:[%s153 + $0x98] sm:%s145] %v230
                %v232 = vld [vmem:[%s152 + $0x12c] sm:%s145]
                %233 = vst [vmem:[%s153 + $0x9c] sm:%s145] %v232
                %v234 = vld [vmem:[%s152 + $0x130] sm:%s145]
                %235 = vst [vmem:[%s153 + $0xa0] sm:%s145] %v234
                %v236 = vld [vmem:[%s152 + $0x134] sm:%s145]
                %237 = vst [vmem:[%s153 + $0xa4] sm:%s145] %v236
                %v238 = vld [vmem:[%s152 + $0x138] sm:%s145]
                %239 = vst [vmem:[%s153 + $0xa8] sm:%s145] %v238
                %v240 = vld [vmem:[%s152 + $0x13c] sm:%s145]
                %241 = vst [vmem:[%s153 + $0xac] sm:%s145] %v240
                %v242 = vld [vmem:[%s152 + $0x140] sm:%s145]
                %243 = vst [vmem:[%s153 + $0xb0] sm:%s145] %v242
                %v244 = vld [vmem:[%s152 + $0x144] sm:%s145]
                %245 = vst [vmem:[%s153 + $0xb4] sm:%s145] %v244
                %v246 = vld [vmem:[%s152 + $0x148] sm:%s145]
                %247 = vst [vmem:[%s153 + $0xb8] sm:%s145] %v246
                %v248 = vld [vmem:[%s152 + $0x14c] sm:%s145]
                %249 = vst [vmem:[%s153 + $0xbc] sm:%s145] %v248
                %v250 = vld [vmem:[%s152 + $0x150] sm:%s145]
                %251 = vst [vmem:[%s153 + $0xc0] sm:%s145] %v250
                %v252 = vld [vmem:[%s152 + $0x154] sm:%s145]
                %253 = vst [vmem:[%s153 + $0xc4] sm:%s145] %v252
                %v254 = vld [vmem:[%s152 + $0x158] sm:%s145]
                %255 = vst [vmem:[%s153 + $0xc8] sm:%s145] %v254
                %v256 = vld [vmem:[%s152 + $0x15c] sm:%s145]
                %257 = vst [vmem:[%s153 + $0xcc] sm:%s145] %v256
                %v258 = vld [vmem:[%s152 + $0x160] sm:%s145]
                %259 = vst [vmem:[%s153 + $0xd0] sm:%s145] %v258
                %v260 = vld [vmem:[%s152 + $0x164] sm:%s145]
                %261 = vst [vmem:[%s153 + $0xd4] sm:%s145] %v260
                %v262 = vld [vmem:[%s152 + $0x1b0] sm:%s145]
                %263 = vst [vmem:[%s153 + $0xd8] sm:%s145] %v262
                %v264 = vld [vmem:[%s152 + $0x1b4] sm:%s145]
                %265 = vst [vmem:[%s153 + $0xdc] sm:%s145] %v264
                %v266 = vld [vmem:[%s152 + $0x1b8] sm:%s145]
                %267 = vst [vmem:[%s153 + $0xe0] sm:%s145] %v266
                %v268 = vld [vmem:[%s152 + $0x1bc] sm:%s145]
                %269 = vst [vmem:[%s153 + $0xe4] sm:%s145] %v268
                %v270 = vld [vmem:[%s152 + $0x1c0] sm:%s145]
                %271 = vst [vmem:[%s153 + $0xe8] sm:%s145] %v270
                %v272 = vld [vmem:[%s152 + $0x1c4] sm:%s145]
                %273 = vst [vmem:[%s153 + $0xec] sm:%s145] %v272
                %v274 = vld [vmem:[%s152 + $0x1c8] sm:%s145]
                %275 = vst [vmem:[%s153 + $0xf0] sm:%s145] %v274
                %v276 = vld [vmem:[%s152 + $0x1cc] sm:%s145]
                %277 = vst [vmem:[%s153 + $0xf4] sm:%s145] %v276
                %v278 = vld [vmem:[%s152 + $0x1d0] sm:%s145]
                %279 = vst [vmem:[%s153 + $0xf8] sm:%s145] %v278
                %v280 = vld [vmem:[%s152 + $0x1d4] sm:%s145]
                %281 = vst [vmem:[%s153 + $0xfc] sm:%s145] %v280
                %v282 = vld [vmem:[%s152 + $0x1d8] sm:%s145]
                %283 = vst [vmem:[%s153 + $0x100] sm:%s145] %v282
                %v284 = vld [vmem:[%s152 + $0x1dc] sm:%s145]
                %285 = vst [vmem:[%s153 + $0x104] sm:%s145] %v284
                %v286 = vld [vmem:[%s152 + $0x1e0] sm:%s145]
                %287 = vst [vmem:[%s153 + $0x108] sm:%s145] %v286
                %v288 = vld [vmem:[%s152 + $0x1e4] sm:%s145]
                %289 = vst [vmem:[%s153 + $0x10c] sm:%s145] %v288
                %v290 = vld [vmem:[%s152 + $0x1e8] sm:%s145]
                %291 = vst [vmem:[%s153 + $0x110] sm:%s145] %v290
                %v292 = vld [vmem:[%s152 + $0x1ec] sm:%s145]
                %293 = vst [vmem:[%s153 + $0x114] sm:%s145] %v292
                %v294 = vld [vmem:[%s152 + $0x1f0] sm:%s145]
                %295 = vst [vmem:[%s153 + $0x118] sm:%s145] %v294
                %v296 = vld [vmem:[%s152 + $0x1f4] sm:%s145]
                %297 = vst [vmem:[%s153 + $0x11c] sm:%s145] %v296
              $region45: #{mnist_net_forward.3} parent=39 // loop_footer
                %s151 = sadd.s32 1, %s147
              $region46: #{mnist_net_forward.3} parent=39 // loop_footer_branch
                %146 = sbr.rel target = $region42
              $region47: #{mnist_net_forward.3} parent=39 // loop_exit
                _
            $region40: #{mnist_net_forward.3} parent=31 // pred_fallthru
              _
          $region32: #{mnist_net_forward.3} parent=27 // pred_fallthru
            _
          %462 = vnop
        $region28: #{mnist_net_forward.3} parent=23 // pred_fallthru
          _
      $region24: #{mnist_net_forward.3} parent=5 // pred_fallthru
        _
      %p463 = scmp.le.s32.totalorder 1, %s9
      %p464 = scmp.lt.s32.totalorder %s9, 3
      %p465 = pnand %p463, %p464
      %p466 = pneg %p465
      // Predicated region
      $region66: #{mnist_net_forward.3} parent=5 // pred_check
        _
      $region67: #{mnist_net_forward.3} parent=5 // pred_check_branch
        %468 = sbr.rel (%p465) target = $region69
      $region68: #{mnist_net_forward.3} parent=5 // pred_region
        %s469 = ssub.s32 %s9, 1
        %s470 = sand.u32 %s22, 1
        %s471 = sand.u32 %s22, 1
        %s472 = smul.addr %s471, 288
        %s473 = scalar_lea.vmem [#allocation2], %s472
        // Predicated region
        $region70: #{mnist_net_forward.3} parent=68 // pred_check
          %p474 = pneg %p35
        $region71: #{mnist_net_forward.3} parent=68 // pred_check_branch
          %476 = sbr.rel (%p474) target = $region73
        $region72: #{mnist_net_forward.3} parent=68 // pred_region
          _
        $region73: #{mnist_net_forward.3} parent=68 // pred_fallthru
          _
        %s477 = sand.u32 %s22, 1
        %s478 = sand.u32 %s22, 1
        %s479 = smul.addr %s478, 288
        %s480 = scalar_lea.vmem [#allocation2], %s479
        %p481 = pneg %p35
        %p482 = pneg %p32
        %p483 = pneg %p56
        %p484 = pneg %p53
        %p485 = pneg %p77
        %p486 = pneg %p74
        %p487 = pneg %p103
        %p488 = pneg %p100
        %s489 = smul.u32 18, %s14
        %p490 = scmp.lt.s32.totalorder %s489, 35
        %s491 = scalar_select %p490, %s489, 35
        %s492 = smul.addr %s491, 8
        %s493 = scalar_lea.vmem %s3, %s492
        %s494 = smul.u32 18, %s14
        %s495 = smul.u32 18, %s14
        %p496 = scmp.lt.s32.totalorder %s495, 35
        %s497 = scalar_select %p496, %s495, 35
        %s498 = smul.addr %s497, 8
        %s499 = scalar_lea.vmem %s3, %s498
        %s500 = smul.u32 18, %s14
        %v501 = vld [vmem:[%s1] sm:$0xf]
        %v502 = vld [vmem:[%s1 + $0x4] sm:$0xf]
        %v503 = vld [vmem:[%s1 + $0x8] sm:$0xf]
        %v504 = vld [vmem:[%s1 + $0xc] sm:$0xf]
        %v505 = vld [vmem:[%s1 + $0x10] sm:$0xf]
        %v506 = vld [vmem:[%s1 + $0x14] sm:$0xf]
        %v507 = vld [vmem:[%s1 + $0x18] sm:$0xf]
        %v508 = vld [vmem:[%s1 + $0x1c] sm:$0xf]
        %v509 = vld [vmem:[%s1 + $0x20] sm:$0xf]
        %v510 = vld [vmem:[%s1 + $0x24] sm:$0xf]
        %v511 = vld [vmem:[%s1 + $0x28] sm:$0xf]
        %v512 = vld [vmem:[%s1 + $0x2c] sm:$0xf]
        %v513 = vld [vmem:[%s1 + $0x30] sm:$0xf]
        %v514 = vld [vmem:[%s1 + $0x34] sm:$0xf]
        %v515 = vld [vmem:[%s1 + $0x38] sm:$0xf]
        %v516 = vld [vmem:[%s1 + $0x3c] sm:$0xf]
        %v517 = vld [vmem:[%s473] sm:$0xf]
        %v518 = vld [vmem:[%s473 + $0x4] sm:$0xf]
        %v519 = vld [vmem:[%s473 + $0x8] sm:$0xf]
        %v520 = vld [vmem:[%s473 + $0xc] sm:$0xf]
        %v521 = vld [vmem:[%s473 + $0x10] sm:$0xf]
        %v522 = vld [vmem:[%s473 + $0x14] sm:$0xf]
        %v523 = vld [vmem:[%s473 + $0x18] sm:$0xf]
        %v524 = vld [vmem:[%s473 + $0x1c] sm:$0xf]
        %v525 = vld [vmem:[%s473 + $0x20] sm:$0xf]
        %v526 = vld [vmem:[%s473 + $0x24] sm:$0xf]
        %v527 = vld [vmem:[%s473 + $0x28] sm:$0xf]
        %v528 = vld [vmem:[%s473 + $0x2c] sm:$0xf]
        %v529 = vld [vmem:[%s473 + $0x30] sm:$0xf]
        %v530 = vld [vmem:[%s473 + $0x34] sm:$0xf]
        %v531 = vld [vmem:[%s473 + $0x38] sm:$0xf]
        %v532 = vld [vmem:[%s473 + $0x3c] sm:$0xf]
        %v533 = vld [vmem:[%s473 + $0x40] sm:$0xf]
        %v534 = vld [vmem:[%s473 + $0x44] sm:$0xf]
        %v553 = vunpack.c.l.b16 %v517
        %v554 = vunpack.c.l.b16 %v518
        %v555 = vunpack.c.l.b16 %v519
        %v556 = vunpack.c.l.b16 %v520
        %v557 = vunpack.c.l.b16 %v521
        %v558 = vunpack.c.l.b16 %v522
        %v559 = vunpack.c.l.b16 %v523
        %v560 = vunpack.c.l.b16 %v524
        %v561 = vunpack.c.l.b16 %v525
        %v562 = vunpack.c.l.b16 %v526
        %v563 = vunpack.c.l.b16 %v527
        %v564 = vunpack.c.l.b16 %v528
        %v565 = vunpack.c.l.b16 %v529
        %v566 = vunpack.c.l.b16 %v530
        %v567 = vunpack.c.l.b16 %v531
        %v568 = vunpack.c.l.b16 %v532
        %v569 = vunpack.c.l.b16 %v533
        %v570 = vunpack.c.l.b16 %v534
        %v571 = vpack.c.b16 %v554, %v553
        %v572 = vpack.c.b16 %v556, %v555
        %v573 = vpack.c.b16 %v558, %v557
        %v574 = vpack.c.b16 %v560, %v559
        %v575 = vpack.c.b16 %v562, %v561
        %v576 = vpack.c.b16 %v564, %v563
        %v577 = vpack.c.b16 %v566, %v565
        %v578 = vpack.c.b16 %v568, %v567
        %v579 = vpack.c.b16 %v570, %v569
        %v605 = vunpack.c.l.b16 %v501
        %v606 = vunpack.c.l.b16 %v502
        %v607 = vunpack.c.l.b16 %v503
        %v608 = vunpack.c.l.b16 %v504
        %v609 = vunpack.c.l.b16 %v505
        %v610 = vunpack.c.l.b16 %v506
        %v611 = vunpack.c.l.b16 %v507
        %v612 = vunpack.c.l.b16 %v508
        %v613 = vunpack.c.l.b16 %v509
        %v614 = vunpack.c.l.b16 %v510
        %v615 = vunpack.c.l.b16 %v511
        %v616 = vunpack.c.l.b16 %v512
        %v617 = vunpack.c.l.b16 %v513
        %v618 = vunpack.c.l.b16 %v514
        %v619 = vunpack.c.l.b16 %v515
        %v620 = vunpack.c.l.b16 %v516
        %v621 = vpack.c.b16 %v606, %v605
        %v622 = vpack.c.b16 %v608, %v607
        %v623 = vpack.c.b16 %v610, %v609
        %v624 = vpack.c.b16 %v612, %v611
        %v625 = vpack.c.b16 %v614, %v613
        %v626 = vpack.c.b16 %v616, %v615
        %v627 = vpack.c.b16 %v618, %v617
        %v628 = vpack.c.b16 %v620, %v619
        %637 = vmatpush.bf16.msra.mxu0 %v628
        %638 = vmatpush.bf16.msra.mxu0 %v627
        %639 = vmatpush.bf16.msra.mxu0 %v626
        %640 = vmatpush.bf16.msra.mxu0 %v625
        %641 = vmatpush.bf16.msra.mxu0 %v624
        %642 = vmatpush.bf16.msra.mxu0 %v623
        %643 = vmatpush.bf16.msra.mxu0 %v622
        %644 = vmatpush.bf16.msra.mxu0 %v621
        %645 = vmatmul.bf16.gmra.mxu0 %v571
        %v646 = vpop.f32.mrf.mxu0
        %v647 = vadd.f32 0.0, %v646
        %v648 = vpop.f32.mrf.mxu0
        %v649 = vadd.f32 0.0, %v648
        %650 = vmatmul.bf16.gmra.mxu0 %v572
        %v651 = vpop.f32.mrf.mxu0
        %v652 = vadd.f32 0.0, %v651
        %v653 = vpop.f32.mrf.mxu0
        %v654 = vadd.f32 0.0, %v653
        %655 = vmatmul.bf16.gmra.mxu0 %v573
        %v656 = vpop.f32.mrf.mxu0
        %v657 = vadd.f32 0.0, %v656
        %v658 = vpop.f32.mrf.mxu0
        %v659 = vadd.f32 0.0, %v658
        %660 = vmatmul.bf16.gmra.mxu0 %v574
        %v661 = vpop.f32.mrf.mxu0
        %v662 = vadd.f32 0.0, %v661
        %v663 = vpop.f32.mrf.mxu0
        %v664 = vadd.f32 0.0, %v663
        %665 = vmatmul.bf16.gmra.mxu0 %v575
        %v666 = vpop.f32.mrf.mxu0
        %v667 = vadd.f32 0.0, %v666
        %v668 = vpop.f32.mrf.mxu0
        %v669 = vadd.f32 0.0, %v668
        %670 = vmatmul.bf16.gmra.mxu0 %v576
        %v671 = vpop.f32.mrf.mxu0
        %v672 = vadd.f32 0.0, %v671
        %v673 = vpop.f32.mrf.mxu0
        %v674 = vadd.f32 0.0, %v673
        %675 = vmatmul.bf16.gmra.mxu0 %v577
        %v676 = vpop.f32.mrf.mxu0
        %v677 = vadd.f32 0.0, %v676
        %v678 = vpop.f32.mrf.mxu0
        %v679 = vadd.f32 0.0, %v678
        %680 = vmatmul.bf16.gmra.mxu0 %v578
        %v681 = vpop.f32.mrf.mxu0
        %v682 = vadd.f32 0.0, %v681
        %v683 = vpop.f32.mrf.mxu0
        %v684 = vadd.f32 0.0, %v683
        %685 = vmatmul.bf16.gmra.mxu0 %v579
        %v686 = vpop.f32.mrf.mxu0
        %v687 = vadd.f32 0.0, %v686
        %v688 = vpop.f32.mrf.mxu0
        %v689 = vadd.f32 0.0, %v688
        %690 = vdwg.mxu0
        %s691 = scalar_lea.vmem %s473, 72 [#allocation2]
        %v692 = vld [vmem:[%s691] sm:$0xf]
        %v693 = vld [vmem:[%s691 + $0x4] sm:$0xf]
        %v694 = vld [vmem:[%s691 + $0x8] sm:$0xf]
        %v695 = vld [vmem:[%s691 + $0xc] sm:$0xf]
        %v696 = vld [vmem:[%s691 + $0x10] sm:$0xf]
        %v697 = vld [vmem:[%s691 + $0x14] sm:$0xf]
        %v698 = vld [vmem:[%s691 + $0x18] sm:$0xf]
        %v699 = vld [vmem:[%s691 + $0x1c] sm:$0xf]
        %v700 = vld [vmem:[%s691 + $0x20] sm:$0xf]
        %v701 = vld [vmem:[%s691 + $0x24] sm:$0xf]
        %v702 = vld [vmem:[%s691 + $0x28] sm:$0xf]
        %v703 = vld [vmem:[%s691 + $0x2c] sm:$0xf]
        %v704 = vld [vmem:[%s691 + $0x30] sm:$0xf]
        %v705 = vld [vmem:[%s691 + $0x34] sm:$0xf]
        %v706 = vld [vmem:[%s691 + $0x38] sm:$0xf]
        %v707 = vld [vmem:[%s691 + $0x3c] sm:$0xf]
        %v708 = vld [vmem:[%s691 + $0x40] sm:$0xf]
        %v709 = vld [vmem:[%s691 + $0x44] sm:$0xf]
        %v728 = vunpack.c.l.b16 %v692
        %v729 = vunpack.c.l.b16 %v693
        %v730 = vunpack.c.l.b16 %v694
        %v731 = vunpack.c.l.b16 %v695
        %v732 = vunpack.c.l.b16 %v696
        %v733 = vunpack.c.l.b16 %v697
        %v734 = vunpack.c.l.b16 %v698
        %v735 = vunpack.c.l.b16 %v699
        %v736 = vunpack.c.l.b16 %v700
        %v737 = vunpack.c.l.b16 %v701
        %v738 = vunpack.c.l.b16 %v702
        %v739 = vunpack.c.l.b16 %v703
        %v740 = vunpack.c.l.b16 %v704
        %v741 = vunpack.c.l.b16 %v705
        %v742 = vunpack.c.l.b16 %v706
        %v743 = vunpack.c.l.b16 %v707
        %v744 = vunpack.c.l.b16 %v708
        %v745 = vunpack.c.l.b16 %v709
        %v746 = vpack.c.b16 %v729, %v728
        %v747 = vpack.c.b16 %v731, %v730
        %v748 = vpack.c.b16 %v733, %v732
        %v749 = vpack.c.b16 %v735, %v734
        %v750 = vpack.c.b16 %v737, %v736
        %v751 = vpack.c.b16 %v739, %v738
        %v752 = vpack.c.b16 %v741, %v740
        %v753 = vpack.c.b16 %v743, %v742
        %v754 = vpack.c.b16 %v745, %v744
        %764 = vmatpush.bf16.msra.mxu0 %v628
        %765 = vmatpush.bf16.msra.mxu0 %v627
        %766 = vmatpush.bf16.msra.mxu0 %v626
        %767 = vmatpush.bf16.msra.mxu0 %v625
        %768 = vmatpush.bf16.msra.mxu0 %v624
        %769 = vmatpush.bf16.msra.mxu0 %v623
        %770 = vmatpush.bf16.msra.mxu0 %v622
        %771 = vmatpush.bf16.msra.mxu0 %v621
        %772 = vmatmul.bf16.gmra.mxu0 %v746
        %v773 = vpop.f32.mrf.mxu0
        %v774 = vadd.f32 0.0, %v773
        %v775 = vpop.f32.mrf.mxu0
        %v776 = vadd.f32 0.0, %v775
        %777 = vmatmul.bf16.gmra.mxu0 %v747
        %v778 = vpop.f32.mrf.mxu0
        %v779 = vadd.f32 0.0, %v778
        %v780 = vpop.f32.mrf.mxu0
        %v781 = vadd.f32 0.0, %v780
        %782 = vmatmul.bf16.gmra.mxu0 %v748
        %v783 = vpop.f32.mrf.mxu0
        %v784 = vadd.f32 0.0, %v783
        %v785 = vpop.f32.mrf.mxu0
        %v786 = vadd.f32 0.0, %v785
        %787 = vmatmul.bf16.gmra.mxu0 %v749
        %v788 = vpop.f32.mrf.mxu0
        %v789 = vadd.f32 0.0, %v788
        %v790 = vpop.f32.mrf.mxu0
        %v791 = vadd.f32 0.0, %v790
        %792 = vmatmul.bf16.gmra.mxu0 %v750
        %v793 = vpop.f32.mrf.mxu0
        %v794 = vadd.f32 0.0, %v793
        %v795 = vpop.f32.mrf.mxu0
        %v796 = vadd.f32 0.0, %v795
        %797 = vmatmul.bf16.gmra.mxu0 %v751
        %v798 = vpop.f32.mrf.mxu0
        %v799 = vadd.f32 0.0, %v798
        %v800 = vpop.f32.mrf.mxu0
        %v801 = vadd.f32 0.0, %v800
        %802 = vmatmul.bf16.gmra.mxu0 %v752
        %v803 = vpop.f32.mrf.mxu0
        %v804 = vadd.f32 0.0, %v803
        %v805 = vpop.f32.mrf.mxu0
        %v806 = vadd.f32 0.0, %v805
        %807 = vmatmul.bf16.gmra.mxu0 %v753
        %v808 = vpop.f32.mrf.mxu0
        %v809 = vadd.f32 0.0, %v808
        %v810 = vpop.f32.mrf.mxu0
        %v811 = vadd.f32 0.0, %v810
        %812 = vmatmul.bf16.gmra.mxu0 %v754
        %v813 = vpop.f32.mrf.mxu0
        %v814 = vadd.f32 0.0, %v813
        %v815 = vpop.f32.mrf.mxu0
        %v816 = vadd.f32 0.0, %v815
        %817 = vdwg.mxu0
        %v818 = vmax.f32 %v647, %v774
        %v819 = vmax.f32 %v649, %v776
        %v820 = vmax.f32 %v652, %v779
        %v821 = vmax.f32 %v654, %v781
        %v822 = vmax.f32 %v657, %v784
        %v823 = vmax.f32 %v659, %v786
        %v824 = vmax.f32 %v662, %v789
        %v825 = vmax.f32 %v664, %v791
        %v826 = vmax.f32 %v667, %v794
        %v827 = vmax.f32 %v669, %v796
        %v828 = vmax.f32 %v672, %v799
        %v829 = vmax.f32 %v674, %v801
        %v830 = vmax.f32 %v677, %v804
        %v831 = vmax.f32 %v679, %v806
        %v832 = vmax.f32 %v682, %v809
        %v833 = vmax.f32 %v684, %v811
        %v834 = vmax.f32 %v687, %v814
        %v835 = vmax.f32 %v689, %v816
        %s836 = scalar_lea.vmem %s473, 144 [#allocation2]
        %v837 = vld [vmem:[%s836] sm:$0xf]
        %v838 = vld [vmem:[%s836 + $0x4] sm:$0xf]
        %v839 = vld [vmem:[%s836 + $0x8] sm:$0xf]
        %v840 = vld [vmem:[%s836 + $0xc] sm:$0xf]
        %v841 = vld [vmem:[%s836 + $0x10] sm:$0xf]
        %v842 = vld [vmem:[%s836 + $0x14] sm:$0xf]
        %v843 = vld [vmem:[%s836 + $0x18] sm:$0xf]
        %v844 = vld [vmem:[%s836 + $0x1c] sm:$0xf]
        %v845 = vld [vmem:[%s836 + $0x20] sm:$0xf]
        %v846 = vld [vmem:[%s836 + $0x24] sm:$0xf]
        %v847 = vld [vmem:[%s836 + $0x28] sm:$0xf]
        %v848 = vld [vmem:[%s836 + $0x2c] sm:$0xf]
        %v849 = vld [vmem:[%s836 + $0x30] sm:$0xf]
        %v850 = vld [vmem:[%s836 + $0x34] sm:$0xf]
        %v851 = vld [vmem:[%s836 + $0x38] sm:$0xf]
        %v852 = vld [vmem:[%s836 + $0x3c] sm:$0xf]
        %v853 = vld [vmem:[%s836 + $0x40] sm:$0xf]
        %v854 = vld [vmem:[%s836 + $0x44] sm:$0xf]
        %v873 = vunpack.c.l.b16 %v837
        %v874 = vunpack.c.l.b16 %v838
        %v875 = vunpack.c.l.b16 %v839
        %v876 = vunpack.c.l.b16 %v840
        %v877 = vunpack.c.l.b16 %v841
        %v878 = vunpack.c.l.b16 %v842
        %v879 = vunpack.c.l.b16 %v843
        %v880 = vunpack.c.l.b16 %v844
        %v881 = vunpack.c.l.b16 %v845
        %v882 = vunpack.c.l.b16 %v846
        %v883 = vunpack.c.l.b16 %v847
        %v884 = vunpack.c.l.b16 %v848
        %v885 = vunpack.c.l.b16 %v849
        %v886 = vunpack.c.l.b16 %v850
        %v887 = vunpack.c.l.b16 %v851
        %v888 = vunpack.c.l.b16 %v852
        %v889 = vunpack.c.l.b16 %v853
        %v890 = vunpack.c.l.b16 %v854
        %v891 = vpack.c.b16 %v874, %v873
        %v892 = vpack.c.b16 %v876, %v875
        %v893 = vpack.c.b16 %v878, %v877
        %v894 = vpack.c.b16 %v880, %v879
        %v895 = vpack.c.b16 %v882, %v881
        %v896 = vpack.c.b16 %v884, %v883
        %v897 = vpack.c.b16 %v886, %v885
        %v898 = vpack.c.b16 %v888, %v887
        %v899 = vpack.c.b16 %v890, %v889
        %909 = vmatpush.bf16.msra.mxu0 %v628
        %910 = vmatpush.bf16.msra.mxu0 %v627
        %911 = vmatpush.bf16.msra.mxu0 %v626
        %912 = vmatpush.bf16.msra.mxu0 %v625
        %913 = vmatpush.bf16.msra.mxu0 %v624
        %914 = vmatpush.bf16.msra.mxu0 %v623
        %915 = vmatpush.bf16.msra.mxu0 %v622
        %916 = vmatpush.bf16.msra.mxu0 %v621
        %917 = vmatmul.bf16.gmra.mxu0 %v891
        %v918 = vpop.f32.mrf.mxu0
        %v919 = vadd.f32 0.0, %v918
        %v920 = vpop.f32.mrf.mxu0
        %v921 = vadd.f32 0.0, %v920
        %922 = vmatmul.bf16.gmra.mxu0 %v892
        %v923 = vpop.f32.mrf.mxu0
        %v924 = vadd.f32 0.0, %v923
        %v925 = vpop.f32.mrf.mxu0
        %v926 = vadd.f32 0.0, %v925
        %927 = vmatmul.bf16.gmra.mxu0 %v893
        %v928 = vpop.f32.mrf.mxu0
        %v929 = vadd.f32 0.0, %v928
        %v930 = vpop.f32.mrf.mxu0
        %v931 = vadd.f32 0.0, %v930
        %932 = vmatmul.bf16.gmra.mxu0 %v894
        %v933 = vpop.f32.mrf.mxu0
        %v934 = vadd.f32 0.0, %v933
        %v935 = vpop.f32.mrf.mxu0
        %v936 = vadd.f32 0.0, %v935
        %937 = vmatmul.bf16.gmra.mxu0 %v895
        %v938 = vpop.f32.mrf.mxu0
        %v939 = vadd.f32 0.0, %v938
        %v940 = vpop.f32.mrf.mxu0
        %v941 = vadd.f32 0.0, %v940
        %942 = vmatmul.bf16.gmra.mxu0 %v896
        %v943 = vpop.f32.mrf.mxu0
        %v944 = vadd.f32 0.0, %v943
        %v945 = vpop.f32.mrf.mxu0
        %v946 = vadd.f32 0.0, %v945
        %947 = vmatmul.bf16.gmra.mxu0 %v897
        %v948 = vpop.f32.mrf.mxu0
        %v949 = vadd.f32 0.0, %v948
        %v950 = vpop.f32.mrf.mxu0
        %v951 = vadd.f32 0.0, %v950
        %952 = vmatmul.bf16.gmra.mxu0 %v898
        %v953 = vpop.f32.mrf.mxu0
        %v954 = vadd.f32 0.0, %v953
        %v955 = vpop.f32.mrf.mxu0
        %v956 = vadd.f32 0.0, %v955
        %957 = vmatmul.bf16.gmra.mxu0 %v899
        %v958 = vpop.f32.mrf.mxu0
        %v959 = vadd.f32 0.0, %v958
        %v960 = vpop.f32.mrf.mxu0
        %v961 = vadd.f32 0.0, %v960
        %962 = vdwg.mxu0
        %v963 = vmax.f32 %v818, %v919
        %v964 = vmax.f32 %v819, %v921
        %v965 = vmax.f32 %v820, %v924
        %v966 = vmax.f32 %v821, %v926
        %v967 = vmax.f32 %v822, %v929
        %v968 = vmax.f32 %v823, %v931
        %v969 = vmax.f32 %v824, %v934
        %v970 = vmax.f32 %v825, %v936
        %v971 = vmax.f32 %v826, %v939
        %v972 = vmax.f32 %v827, %v941
        %v973 = vmax.f32 %v828, %v944
        %v974 = vmax.f32 %v829, %v946
        %v975 = vmax.f32 %v830, %v949
        %v976 = vmax.f32 %v831, %v951
        %v977 = vmax.f32 %v832, %v954
        %v978 = vmax.f32 %v833, %v956
        %v979 = vmax.f32 %v834, %v959
        %v980 = vmax.f32 %v835, %v961
        %s981 = scalar_lea.vmem %s473, 216 [#allocation2]
        %v982 = vld [vmem:[%s981] sm:$0xf]
        %v983 = vld [vmem:[%s981 + $0x4] sm:$0xf]
        %v984 = vld [vmem:[%s981 + $0x8] sm:$0xf]
        %v985 = vld [vmem:[%s981 + $0xc] sm:$0xf]
        %v986 = vld [vmem:[%s981 + $0x10] sm:$0xf]
        %v987 = vld [vmem:[%s981 + $0x14] sm:$0xf]
        %v988 = vld [vmem:[%s981 + $0x18] sm:$0xf]
        %v989 = vld [vmem:[%s981 + $0x1c] sm:$0xf]
        %v990 = vld [vmem:[%s981 + $0x20] sm:$0xf]
        %v991 = vld [vmem:[%s981 + $0x24] sm:$0xf]
        %v992 = vld [vmem:[%s981 + $0x28] sm:$0xf]
        %v993 = vld [vmem:[%s981 + $0x2c] sm:$0xf]
        %v994 = vld [vmem:[%s981 + $0x30] sm:$0xf]
        %v995 = vld [vmem:[%s981 + $0x34] sm:$0xf]
        %v996 = vld [vmem:[%s981 + $0x38] sm:$0xf]
        %v997 = vld [vmem:[%s981 + $0x3c] sm:$0xf]
        %v998 = vld [vmem:[%s981 + $0x40] sm:$0xf]
        %v999 = vld [vmem:[%s981 + $0x44] sm:$0xf]
        %v1018 = vunpack.c.l.b16 %v982
        %v1019 = vunpack.c.l.b16 %v983
        %v1020 = vunpack.c.l.b16 %v984
        %v1021 = vunpack.c.l.b16 %v985
        %v1022 = vunpack.c.l.b16 %v986
        %v1023 = vunpack.c.l.b16 %v987
        %v1024 = vunpack.c.l.b16 %v988
        %v1025 = vunpack.c.l.b16 %v989
        %v1026 = vunpack.c.l.b16 %v990
        %v1027 = vunpack.c.l.b16 %v991
        %v1028 = vunpack.c.l.b16 %v992
        %v1029 = vunpack.c.l.b16 %v993
        %v1030 = vunpack.c.l.b16 %v994
        %v1031 = vunpack.c.l.b16 %v995
        %v1032 = vunpack.c.l.b16 %v996
        %v1033 = vunpack.c.l.b16 %v997
        %v1034 = vunpack.c.l.b16 %v998
        %v1035 = vunpack.c.l.b16 %v999
        %v1036 = vpack.c.b16 %v1019, %v1018
        %v1037 = vpack.c.b16 %v1021, %v1020
        %v1038 = vpack.c.b16 %v1023, %v1022
        %v1039 = vpack.c.b16 %v1025, %v1024
        %v1040 = vpack.c.b16 %v1027, %v1026
        %v1041 = vpack.c.b16 %v1029, %v1028
        %v1042 = vpack.c.b16 %v1031, %v1030
        %v1043 = vpack.c.b16 %v1033, %v1032
        %v1044 = vpack.c.b16 %v1035, %v1034
        %1054 = vmatpush.bf16.msra.mxu0 %v628
        %1055 = vmatpush.bf16.msra.mxu0 %v627
        %1056 = vmatpush.bf16.msra.mxu0 %v626
        %1057 = vmatpush.bf16.msra.mxu0 %v625
        %1058 = vmatpush.bf16.msra.mxu0 %v624
        %1059 = vmatpush.bf16.msra.mxu0 %v623
        %1060 = vmatpush.bf16.msra.mxu0 %v622
        %1061 = vmatpush.bf16.msra.mxu0 %v621
        %1062 = vmatmul.bf16.gmra.mxu0 %v1036
        %v1063 = vpop.f32.mrf.mxu0
        %v1064 = vadd.f32 0.0, %v1063
        %v1065 = vpop.f32.mrf.mxu0
        %v1066 = vadd.f32 0.0, %v1065
        %1067 = vmatmul.bf16.gmra.mxu0 %v1037
        %v1068 = vpop.f32.mrf.mxu0
        %v1069 = vadd.f32 0.0, %v1068
        %v1070 = vpop.f32.mrf.mxu0
        %v1071 = vadd.f32 0.0, %v1070
        %1072 = vmatmul.bf16.gmra.mxu0 %v1038
        %v1073 = vpop.f32.mrf.mxu0
        %v1074 = vadd.f32 0.0, %v1073
        %v1075 = vpop.f32.mrf.mxu0
        %v1076 = vadd.f32 0.0, %v1075
        %1077 = vmatmul.bf16.gmra.mxu0 %v1039
        %v1078 = vpop.f32.mrf.mxu0
        %v1079 = vadd.f32 0.0, %v1078
        %v1080 = vpop.f32.mrf.mxu0
        %v1081 = vadd.f32 0.0, %v1080
        %1082 = vmatmul.bf16.gmra.mxu0 %v1040
        %v1083 = vpop.f32.mrf.mxu0
        %v1084 = vadd.f32 0.0, %v1083
        %v1085 = vpop.f32.mrf.mxu0
        %v1086 = vadd.f32 0.0, %v1085
        %1087 = vmatmul.bf16.gmra.mxu0 %v1041
        %v1088 = vpop.f32.mrf.mxu0
        %v1089 = vadd.f32 0.0, %v1088
        %v1090 = vpop.f32.mrf.mxu0
        %v1091 = vadd.f32 0.0, %v1090
        %1092 = vmatmul.bf16.gmra.mxu0 %v1042
        %v1093 = vpop.f32.mrf.mxu0
        %v1094 = vadd.f32 0.0, %v1093
        %v1095 = vpop.f32.mrf.mxu0
        %v1096 = vadd.f32 0.0, %v1095
        %1097 = vmatmul.bf16.gmra.mxu0 %v1043
        %v1098 = vpop.f32.mrf.mxu0
        %v1099 = vadd.f32 0.0, %v1098
        %v1100 = vpop.f32.mrf.mxu0
        %v1101 = vadd.f32 0.0, %v1100
        %1102 = vmatmul.bf16.gmra.mxu0 %v1044
        %v1103 = vpop.f32.mrf.mxu0
        %v1104 = vadd.f32 0.0, %v1103
        %v1105 = vpop.f32.mrf.mxu0
        %v1106 = vadd.f32 0.0, %v1105
        %1107 = vdwg.mxu0
        %v1108 = vmax.f32 %v963, %v1064
        %v1109 = vmax.f32 %v964, %v1066
        %v1110 = vmax.f32 %v965, %v1069
        %v1111 = vmax.f32 %v966, %v1071
        %v1112 = vmax.f32 %v967, %v1074
        %v1113 = vmax.f32 %v968, %v1076
        %v1114 = vmax.f32 %v969, %v1079
        %v1115 = vmax.f32 %v970, %v1081
        %v1116 = vmax.f32 %v971, %v1084
        %v1117 = vmax.f32 %v972, %v1086
        %v1118 = vmax.f32 %v973, %v1089
        %v1119 = vmax.f32 %v974, %v1091
        %v1120 = vmax.f32 %v975, %v1094
        %v1121 = vmax.f32 %v976, %v1096
        %v1122 = vmax.f32 %v977, %v1099
        %v1123 = vmax.f32 %v978, %v1101
        %v1124 = vmax.f32 %v979, %v1104
        %v1125 = vmax.f32 %v980, %v1106
        %v1126 = vld [vmem:[%s2] sm:$0x1]
        %v1128 = vperm.slane %v1126, 0
        %v1130 = vadd.f32 %v1108, %v1128
        %v1131 = vadd.f32 %v1109, %v1128
        %v1132 = vadd.f32 %v1110, %v1128
        %v1133 = vadd.f32 %v1111, %v1128
        %v1134 = vadd.f32 %v1112, %v1128
        %v1135 = vadd.f32 %v1113, %v1128
        %v1136 = vadd.f32 %v1114, %v1128
        %v1137 = vadd.f32 %v1115, %v1128
        %v1138 = vadd.f32 %v1116, %v1128
        %v1139 = vadd.f32 %v1117, %v1128
        %v1140 = vadd.f32 %v1118, %v1128
        %v1141 = vadd.f32 %v1119, %v1128
        %v1142 = vadd.f32 %v1120, %v1128
        %v1143 = vadd.f32 %v1121, %v1128
        %v1144 = vadd.f32 %v1122, %v1128
        %v1145 = vadd.f32 %v1123, %v1128
        %v1146 = vadd.f32 %v1124, %v1128
        %v1147 = vadd.f32 %v1125, %v1128
        %v1148 = vmax.f32 %v1130, 0.0
        %v1149 = vmax.f32 %v1131, 0.0
        %v1150 = vmax.f32 %v1132, 0.0
        %v1151 = vmax.f32 %v1133, 0.0
        %v1152 = vmax.f32 %v1134, 0.0
        %v1153 = vmax.f32 %v1135, 0.0
        %v1154 = vmax.f32 %v1136, 0.0
        %v1155 = vmax.f32 %v1137, 0.0
        %v1156 = vmax.f32 %v1138, 0.0
        %v1157 = vmax.f32 %v1139, 0.0
        %v1158 = vmax.f32 %v1140, 0.0
        %v1159 = vmax.f32 %v1141, 0.0
        %v1160 = vmax.f32 %v1142, 0.0
        %v1161 = vmax.f32 %v1143, 0.0
        %v1162 = vmax.f32 %v1144, 0.0
        %v1163 = vmax.f32 %v1145, 0.0
        %v1164 = vmax.f32 %v1146, 0.0
        %v1165 = vmax.f32 %v1147, 0.0
        %vm1166 = vcmask 80896
        %1167 = vst.msk [vmem:[%s499] sm:$0xff] %vm1166, %v1148
        %1168 = vst.msk [vmem:[%s499 + $0x8] sm:$0xff] %vm1166, %v1149
        %1169 = vst.msk [vmem:[%s499 + $0x10] sm:$0xff] %vm1166, %v1150
        %1170 = vst.msk [vmem:[%s499 + $0x18] sm:$0xff] %vm1166, %v1151
        %1171 = vst.msk [vmem:[%s499 + $0x20] sm:$0xff] %vm1166, %v1152
        %1172 = vst.msk [vmem:[%s499 + $0x28] sm:$0xff] %vm1166, %v1153
        %1173 = vst.msk [vmem:[%s499 + $0x30] sm:$0xff] %vm1166, %v1154
        %1174 = vst.msk [vmem:[%s499 + $0x38] sm:$0xff] %vm1166, %v1155
        %1175 = vst.msk [vmem:[%s499 + $0x40] sm:$0xff] %vm1166, %v1156
        %1176 = vst.msk [vmem:[%s499 + $0x48] sm:$0xff] %vm1166, %v1157
        %1177 = vst.msk [vmem:[%s499 + $0x50] sm:$0xff] %vm1166, %v1158
        %1178 = vst.msk [vmem:[%s499 + $0x58] sm:$0xff] %vm1166, %v1159
        %1179 = vst.msk [vmem:[%s499 + $0x60] sm:$0xff] %vm1166, %v1160
        %1180 = vst.msk [vmem:[%s499 + $0x68] sm:$0xff] %vm1166, %v1161
        %1181 = vst.msk [vmem:[%s499 + $0x70] sm:$0xff] %vm1166, %v1162
        %1182 = vst.msk [vmem:[%s499 + $0x78] sm:$0xff] %vm1166, %v1163
        %1183 = vst.msk [vmem:[%s499 + $0x80] sm:$0xff] %vm1166, %v1164
        %1184 = vst.msk [vmem:[%s499 + $0x88] sm:$0xff] %vm1166, %v1165
        %s1185 = smul.u32 18, %s14
        %p1186 = scmp.lt.s32.totalorder %s1185, 35
        %s1187 = scalar_select %p1186, %s1185, 35
        %s1188 = smul.addr %s1187, 8
        %s1189 = scalar_lea.vmem %s3, %s1188
        // Predicated region
        $region74: #{mnist_net_forward.3} parent=68 // pred_check
          %p1190 = pneg %p100
        $region75: #{mnist_net_forward.3} parent=68 // pred_check_branch
          %1192 = sbr.rel (%p1190) target = $region77
        $region76: #{mnist_net_forward.3} parent=68 // pred_region
          %s1193 = smul.u32 18, %s14
        $region77: #{mnist_net_forward.3} parent=68 // pred_fallthru
          _
      $region69: #{mnist_net_forward.3} parent=5 // pred_fallthru
        _
      %p1194 = scmp.le.s32.totalorder 2, %s9
      // Predicated region
      $region78: #{mnist_net_forward.3} parent=5 // pred_check
        %p1195 = pneg %p1194
      $region79: #{mnist_net_forward.3} parent=5 // pred_check_branch
        %1197 = sbr.rel (%p1195) target = $region81
      $region80: #{mnist_net_forward.3} parent=5 // pred_region
        %s1198 = ssub.s32 %s9, 2
        // Predicated region
        $region82: #{mnist_net_forward.3} parent=80 // pred_check
          %p1199 = pneg %p106
        $region83: #{mnist_net_forward.3} parent=80 // pred_check_branch
          %1201 = sbr.rel (%p1199) target = $region85
        $region84: #{mnist_net_forward.3} parent=80 // pred_region
          %s1202 = smul.u32 18, %s15
          %p1203 = scmp.lt.s32.totalorder %s1202, 35
          %s1204 = scalar_select %p1203, %s1202, 35
          %s1205 = smul.addr %s1204, 8
          %s1206 = scalar_lea.vmem %s3, %s1205
        $region85: #{mnist_net_forward.3} parent=80 // pred_fallthru
          _
      $region81: #{mnist_net_forward.3} parent=5 // pred_fallthru
        _
    $region6: #{mnist_net_forward.3} parent=1 // loop_footer
      %s13 = sadd.s32 1, %s9
    $region7: #{mnist_net_forward.3} parent=1 // loop_footer_branch
      %8 = sbr.rel target = $region3
    $region8: #{mnist_net_forward.3} parent=1 // loop_exit
      _

// kernel: mnist_net_forward.4
$region0: #{mnist_net_forward.4}
  #allocation0 [shape = 'u32[]', space=smem, size = 0x4, offset = 0x4, fixed_abs, tag = 'smem constant byte address 0x4 - core index']
  #allocation1 [shape = 'u32[72,128]{1,0:T(1,128)}', space=vmem, size = 0x9000, scoped, tag = 'internal scratch']
  %s0 = inlined_call_operand.vmem [shape: bf16[4,32,256], index: 0, kind: input, shape index: {}]
  %s1 = inlined_call_operand.vmem [shape: bf16[256,20], index: 1, kind: input, shape index: {}]
  %s2 = inlined_call_operand.vmem [shape: f32[1,20], index: 2, kind: input, shape index: {}]
  %s3 = inlined_call_operand.vmem [shape: f32[32,20], index: 3, kind: output, shape index: {}]
  %s4 = sld [smem:[#allocation0]]
  $region22: #{mnist_net_forward.4} parent=0
    _
  %s6 = ssub.s32 1, %s4
  %s7 = scalar_select 0, %s6, %s4
  // Predicated region
  $region2: #{mnist_net_forward.4} parent=0 // pred_check
    _
  $region3: #{mnist_net_forward.4} parent=0 // pred_check_branch
    %9 = sbr.rel (0) target = $region5
  $region4: #{mnist_net_forward.4} parent=0 // pred_region
    _
  $region5: #{mnist_net_forward.4} parent=0 // pred_fallthru
    _
  // Predicated region
  $region6: #{mnist_net_forward.4} parent=0 // pred_check
    _
  $region7: #{mnist_net_forward.4} parent=0 // pred_check_branch
    %11 = sbr.rel (0) target = $region9
  $region8: #{mnist_net_forward.4} parent=0 // pred_region
    _
  $region9: #{mnist_net_forward.4} parent=0 // pred_fallthru
    _
  // Predicated region
  $region10: #{mnist_net_forward.4} parent=0 // pred_check
    _
  $region11: #{mnist_net_forward.4} parent=0 // pred_check_branch
    %13 = sbr.rel (0) target = $region13
  $region12: #{mnist_net_forward.4} parent=0 // pred_region
    _
  $region13: #{mnist_net_forward.4} parent=0 // pred_fallthru
    _
  %v14 = vld [vmem:[%s1] sm:$0xf]
  %v15 = vld [vmem:[%s1 + $0x4] sm:$0xf]
  %v16 = vld [vmem:[%s1 + $0x8] sm:$0xf]
  %v17 = vld [vmem:[%s1 + $0xc] sm:$0xf]
  %v18 = vld [vmem:[%s1 + $0x10] sm:$0xf]
  %v19 = vld [vmem:[%s1 + $0x14] sm:$0xf]
  %v20 = vld [vmem:[%s1 + $0x18] sm:$0xf]
  %v21 = vld [vmem:[%s1 + $0x1c] sm:$0xf]
  %v22 = vld [vmem:[%s1 + $0x20] sm:$0xf]
  %v23 = vld [vmem:[%s1 + $0x24] sm:$0xf]
  %v24 = vld [vmem:[%s1 + $0x28] sm:$0xf]
  %v25 = vld [vmem:[%s1 + $0x2c] sm:$0xf]
  %v26 = vld [vmem:[%s1 + $0x30] sm:$0xf]
  %v27 = vld [vmem:[%s1 + $0x34] sm:$0xf]
  %v28 = vld [vmem:[%s1 + $0x38] sm:$0xf]
  %v29 = vld [vmem:[%s1 + $0x3c] sm:$0xf]
  %v30 = vld [vmem:[%s1 + $0x40] sm:$0xf]
  %v31 = vld [vmem:[%s1 + $0x44] sm:$0xf]
  %v32 = vld [vmem:[%s1 + $0x48] sm:$0xf]
  %v33 = vld [vmem:[%s1 + $0x4c] sm:$0xf]
  %v34 = vld [vmem:[%s1 + $0x50] sm:$0xf]
  %v35 = vld [vmem:[%s1 + $0x54] sm:$0xf]
  %v36 = vld [vmem:[%s1 + $0x58] sm:$0xf]
  %v37 = vld [vmem:[%s1 + $0x5c] sm:$0xf]
  %v38 = vld [vmem:[%s1 + $0x60] sm:$0xf]
  %v39 = vld [vmem:[%s1 + $0x64] sm:$0xf]
  %v40 = vld [vmem:[%s1 + $0x68] sm:$0xf]
  %v41 = vld [vmem:[%s1 + $0x6c] sm:$0xf]
  %v42 = vld [vmem:[%s1 + $0x70] sm:$0xf]
  %v43 = vld [vmem:[%s1 + $0x74] sm:$0xf]
  %v44 = vld [vmem:[%s1 + $0x78] sm:$0xf]
  %v45 = vld [vmem:[%s1 + $0x7c] sm:$0xf]
  %v46 = vld [vmem:[%s0] sm:$0xff]
  %v47 = vld [vmem:[%s0 + $0x8] sm:$0xff]
  %v48 = vld [vmem:[%s0 + $0x10] sm:$0xff]
  %v49 = vld [vmem:[%s0 + $0x18] sm:$0xff]
  %v54 = vunpack.c.l.b16 %v46
  %v55 = vunpack.c.h.b16 %v46
  %v56 = vunpack.c.l.b16 %v47
  %v57 = vunpack.c.h.b16 %v47
  %v58 = vunpack.c.l.b16 %v48
  %v59 = vunpack.c.h.b16 %v48
  %v60 = vunpack.c.l.b16 %v49
  %v61 = vunpack.c.h.b16 %v49
  %v62 = vpack.c.b16 %v56, %v54
  %v63 = vpack.c.b16 %v57, %v55
  %v64 = vpack.c.b16 %v60, %v58
  %v65 = vpack.c.b16 %v61, %v59
  %v102 = vunpack.c.l.b16 %v14
  %v103 = vunpack.c.l.b16 %v15
  %v104 = vunpack.c.l.b16 %v16
  %v105 = vunpack.c.l.b16 %v17
  %v106 = vunpack.c.l.b16 %v18
  %v107 = vunpack.c.l.b16 %v19
  %v108 = vunpack.c.l.b16 %v20
  %v109 = vunpack.c.l.b16 %v21
  %v110 = vunpack.c.l.b16 %v22
  %v111 = vunpack.c.l.b16 %v23
  %v112 = vunpack.c.l.b16 %v24
  %v113 = vunpack.c.l.b16 %v25
  %v114 = vunpack.c.l.b16 %v26
  %v115 = vunpack.c.l.b16 %v27
  %v116 = vunpack.c.l.b16 %v28
  %v117 = vunpack.c.l.b16 %v29
  %v118 = vunpack.c.l.b16 %v30
  %v119 = vunpack.c.l.b16 %v31
  %v120 = vunpack.c.l.b16 %v32
  %v121 = vunpack.c.l.b16 %v33
  %v122 = vunpack.c.l.b16 %v34
  %v123 = vunpack.c.l.b16 %v35
  %v124 = vunpack.c.l.b16 %v36
  %v125 = vunpack.c.l.b16 %v37
  %v126 = vunpack.c.l.b16 %v38
  %v127 = vunpack.c.l.b16 %v39
  %v128 = vunpack.c.l.b16 %v40
  %v129 = vunpack.c.l.b16 %v41
  %v130 = vunpack.c.l.b16 %v42
  %v131 = vunpack.c.l.b16 %v43
  %v132 = vunpack.c.l.b16 %v44
  %v133 = vunpack.c.l.b16 %v45
  %v134 = vpack.c.b16 %v103, %v102
  %v135 = vpack.c.b16 %v105, %v104
  %v136 = vpack.c.b16 %v107, %v106
  %v137 = vpack.c.b16 %v109, %v108
  %v138 = vpack.c.b16 %v111, %v110
  %v139 = vpack.c.b16 %v113, %v112
  %v140 = vpack.c.b16 %v115, %v114
  %v141 = vpack.c.b16 %v117, %v116
  %v142 = vpack.c.b16 %v119, %v118
  %v143 = vpack.c.b16 %v121, %v120
  %v144 = vpack.c.b16 %v123, %v122
  %v145 = vpack.c.b16 %v125, %v124
  %v146 = vpack.c.b16 %v127, %v126
  %v147 = vpack.c.b16 %v129, %v128
  %v148 = vpack.c.b16 %v131, %v130
  %v149 = vpack.c.b16 %v133, %v132
  %166 = vmatpush.bf16.msra.mxu0 %v141
  %167 = vmatpush.bf16.msra.mxu0 %v140
  %168 = vmatpush.bf16.msra.mxu0 %v139
  %169 = vmatpush.bf16.msra.mxu0 %v138
  %170 = vmatpush.bf16.msra.mxu0 %v137
  %171 = vmatpush.bf16.msra.mxu0 %v136
  %172 = vmatpush.bf16.msra.mxu0 %v135
  %173 = vmatpush.bf16.msra.mxu0 %v134
  %174 = vmatmul.bf16.gmra.mxu0 %v62
  %v175 = vpop.f32.mrf.mxu0
  %v176 = vadd.f32 0.0, %v175
  %v177 = vpop.f32.mrf.mxu0
  %v178 = vadd.f32 0.0, %v177
  %179 = vmatmul.bf16.gmra.mxu0 %v64
  %v180 = vpop.f32.mrf.mxu0
  %v181 = vadd.f32 0.0, %v180
  %v182 = vpop.f32.mrf.mxu0
  %v183 = vadd.f32 0.0, %v182
  %184 = vdwg.mxu0
  %185 = vmatpush.bf16.msra.mxu0 %v149
  %186 = vmatpush.bf16.msra.mxu0 %v148
  %187 = vmatpush.bf16.msra.mxu0 %v147
  %188 = vmatpush.bf16.msra.mxu0 %v146
  %189 = vmatpush.bf16.msra.mxu0 %v145
  %190 = vmatpush.bf16.msra.mxu0 %v144
  %191 = vmatpush.bf16.msra.mxu0 %v143
  %192 = vmatpush.bf16.msra.mxu0 %v142
  %193 = vmatmul.bf16.gmra.mxu0 %v63
  %v194 = vpop.f32.mrf.mxu0
  %v195 = vadd.f32 %v176, %v194
  %v196 = vpop.f32.mrf.mxu0
  %v197 = vadd.f32 %v178, %v196
  %198 = vmatmul.bf16.gmra.mxu0 %v65
  %v199 = vpop.f32.mrf.mxu0
  %v200 = vadd.f32 %v181, %v199
  %v201 = vpop.f32.mrf.mxu0
  %v202 = vadd.f32 %v183, %v201
  %203 = vdwg.mxu0
  %s204 = scalar_lea.vmem %s0, 32
  %v205 = vld [vmem:[%s204] sm:$0xff]
  %v206 = vld [vmem:[%s204 + $0x8] sm:$0xff]
  %v207 = vld [vmem:[%s204 + $0x10] sm:$0xff]
  %v208 = vld [vmem:[%s204 + $0x18] sm:$0xff]
  %v213 = vunpack.c.l.b16 %v205
  %v214 = vunpack.c.h.b16 %v205
  %v215 = vunpack.c.l.b16 %v206
  %v216 = vunpack.c.h.b16 %v206
  %v217 = vunpack.c.l.b16 %v207
  %v218 = vunpack.c.h.b16 %v207
  %v219 = vunpack.c.l.b16 %v208
  %v220 = vunpack.c.h.b16 %v208
  %v221 = vpack.c.b16 %v215, %v213
  %v222 = vpack.c.b16 %v216, %v214
  %v223 = vpack.c.b16 %v219, %v217
  %v224 = vpack.c.b16 %v220, %v218
  %229 = vmatpush.bf16.msra.mxu0 %v141
  %230 = vmatpush.bf16.msra.mxu0 %v140
  %231 = vmatpush.bf16.msra.mxu0 %v139
  %232 = vmatpush.bf16.msra.mxu0 %v138
  %233 = vmatpush.bf16.msra.mxu0 %v137
  %234 = vmatpush.bf16.msra.mxu0 %v136
  %235 = vmatpush.bf16.msra.mxu0 %v135
  %236 = vmatpush.bf16.msra.mxu0 %v134
  %237 = vmatmul.bf16.gmra.mxu0 %v221
  %v238 = vpop.f32.mrf.mxu0
  %v239 = vadd.f32 0.0, %v238
  %v240 = vpop.f32.mrf.mxu0
  %v241 = vadd.f32 0.0, %v240
  %242 = vmatmul.bf16.gmra.mxu0 %v223
  %v243 = vpop.f32.mrf.mxu0
  %v244 = vadd.f32 0.0, %v243
  %v245 = vpop.f32.mrf.mxu0
  %v246 = vadd.f32 0.0, %v245
  %247 = vdwg.mxu0
  %248 = vmatpush.bf16.msra.mxu0 %v149
  %249 = vmatpush.bf16.msra.mxu0 %v148
  %250 = vmatpush.bf16.msra.mxu0 %v147
  %251 = vmatpush.bf16.msra.mxu0 %v146
  %252 = vmatpush.bf16.msra.mxu0 %v145
  %253 = vmatpush.bf16.msra.mxu0 %v144
  %254 = vmatpush.bf16.msra.mxu0 %v143
  %255 = vmatpush.bf16.msra.mxu0 %v142
  %256 = vmatmul.bf16.gmra.mxu0 %v222
  %v257 = vpop.f32.mrf.mxu0
  %v258 = vadd.f32 %v239, %v257
  %v259 = vpop.f32.mrf.mxu0
  %v260 = vadd.f32 %v241, %v259
  %261 = vmatmul.bf16.gmra.mxu0 %v224
  %v262 = vpop.f32.mrf.mxu0
  %v263 = vadd.f32 %v244, %v262
  %v264 = vpop.f32.mrf.mxu0
  %v265 = vadd.f32 %v246, %v264
  %266 = vdwg.mxu0
  %v267 = vmax.f32 %v195, %v258
  %v268 = vmax.f32 %v197, %v260
  %v269 = vmax.f32 %v200, %v263
  %v270 = vmax.f32 %v202, %v265
  %s271 = scalar_lea.vmem %s0, 64
  %v272 = vld [vmem:[%s271] sm:$0xff]
  %v273 = vld [vmem:[%s271 + $0x8] sm:$0xff]
  %v274 = vld [vmem:[%s271 + $0x10] sm:$0xff]
  %v275 = vld [vmem:[%s271 + $0x18] sm:$0xff]
  %v280 = vunpack.c.l.b16 %v272
  %v281 = vunpack.c.h.b16 %v272
  %v282 = vunpack.c.l.b16 %v273
  %v283 = vunpack.c.h.b16 %v273
  %v284 = vunpack.c.l.b16 %v274
  %v285 = vunpack.c.h.b16 %v274
  %v286 = vunpack.c.l.b16 %v275
  %v287 = vunpack.c.h.b16 %v275
  %v288 = vpack.c.b16 %v282, %v280
  %v289 = vpack.c.b16 %v283, %v281
  %v290 = vpack.c.b16 %v286, %v284
  %v291 = vpack.c.b16 %v287, %v285
  %296 = vmatpush.bf16.msra.mxu0 %v141
  %297 = vmatpush.bf16.msra.mxu0 %v140
  %298 = vmatpush.bf16.msra.mxu0 %v139
  %299 = vmatpush.bf16.msra.mxu0 %v138
  %300 = vmatpush.bf16.msra.mxu0 %v137
  %301 = vmatpush.bf16.msra.mxu0 %v136
  %302 = vmatpush.bf16.msra.mxu0 %v135
  %303 = vmatpush.bf16.msra.mxu0 %v134
  %304 = vmatmul.bf16.gmra.mxu0 %v288
  %v305 = vpop.f32.mrf.mxu0
  %v306 = vadd.f32 0.0, %v305
  %v307 = vpop.f32.mrf.mxu0
  %v308 = vadd.f32 0.0, %v307
  %309 = vmatmul.bf16.gmra.mxu0 %v290
  %v310 = vpop.f32.mrf.mxu0
  %v311 = vadd.f32 0.0, %v310
  %v312 = vpop.f32.mrf.mxu0
  %v313 = vadd.f32 0.0, %v312
  %314 = vdwg.mxu0
  %315 = vmatpush.bf16.msra.mxu0 %v149
  %316 = vmatpush.bf16.msra.mxu0 %v148
  %317 = vmatpush.bf16.msra.mxu0 %v147
  %318 = vmatpush.bf16.msra.mxu0 %v146
  %319 = vmatpush.bf16.msra.mxu0 %v145
  %320 = vmatpush.bf16.msra.mxu0 %v144
  %321 = vmatpush.bf16.msra.mxu0 %v143
  %322 = vmatpush.bf16.msra.mxu0 %v142
  %323 = vmatmul.bf16.gmra.mxu0 %v289
  %v324 = vpop.f32.mrf.mxu0
  %v325 = vadd.f32 %v306, %v324
  %v326 = vpop.f32.mrf.mxu0
  %v327 = vadd.f32 %v308, %v326
  %328 = vmatmul.bf16.gmra.mxu0 %v291
  %v329 = vpop.f32.mrf.mxu0
  %v330 = vadd.f32 %v311, %v329
  %v331 = vpop.f32.mrf.mxu0
  %v332 = vadd.f32 %v313, %v331
  %333 = vdwg.mxu0
  %v334 = vmax.f32 %v267, %v325
  %v335 = vmax.f32 %v268, %v327
  %v336 = vmax.f32 %v269, %v330
  %v337 = vmax.f32 %v270, %v332
  %s338 = scalar_lea.vmem %s0, 96
  %v339 = vld [vmem:[%s338] sm:$0xff]
  %v340 = vld [vmem:[%s338 + $0x8] sm:$0xff]
  %v341 = vld [vmem:[%s338 + $0x10] sm:$0xff]
  %v342 = vld [vmem:[%s338 + $0x18] sm:$0xff]
  %v347 = vunpack.c.l.b16 %v339
  %v348 = vunpack.c.h.b16 %v339
  %v349 = vunpack.c.l.b16 %v340
  %v350 = vunpack.c.h.b16 %v340
  %v351 = vunpack.c.l.b16 %v341
  %v352 = vunpack.c.h.b16 %v341
  %v353 = vunpack.c.l.b16 %v342
  %v354 = vunpack.c.h.b16 %v342
  %v355 = vpack.c.b16 %v349, %v347
  %v356 = vpack.c.b16 %v350, %v348
  %v357 = vpack.c.b16 %v353, %v351
  %v358 = vpack.c.b16 %v354, %v352
  %363 = vmatpush.bf16.msra.mxu0 %v141
  %364 = vmatpush.bf16.msra.mxu0 %v140
  %365 = vmatpush.bf16.msra.mxu0 %v139
  %366 = vmatpush.bf16.msra.mxu0 %v138
  %367 = vmatpush.bf16.msra.mxu0 %v137
  %368 = vmatpush.bf16.msra.mxu0 %v136
  %369 = vmatpush.bf16.msra.mxu0 %v135
  %370 = vmatpush.bf16.msra.mxu0 %v134
  %371 = vmatmul.bf16.gmra.mxu0 %v355
  %v372 = vpop.f32.mrf.mxu0
  %v373 = vadd.f32 0.0, %v372
  %v374 = vpop.f32.mrf.mxu0
  %v375 = vadd.f32 0.0, %v374
  %376 = vmatmul.bf16.gmra.mxu0 %v357
  %v377 = vpop.f32.mrf.mxu0
  %v378 = vadd.f32 0.0, %v377
  %v379 = vpop.f32.mrf.mxu0
  %v380 = vadd.f32 0.0, %v379
  %381 = vdwg.mxu0
  %382 = vmatpush.bf16.msra.mxu0 %v149
  %383 = vmatpush.bf16.msra.mxu0 %v148
  %384 = vmatpush.bf16.msra.mxu0 %v147
  %385 = vmatpush.bf16.msra.mxu0 %v146
  %386 = vmatpush.bf16.msra.mxu0 %v145
  %387 = vmatpush.bf16.msra.mxu0 %v144
  %388 = vmatpush.bf16.msra.mxu0 %v143
  %389 = vmatpush.bf16.msra.mxu0 %v142
  %390 = vmatmul.bf16.gmra.mxu0 %v356
  %v391 = vpop.f32.mrf.mxu0
  %v392 = vadd.f32 %v373, %v391
  %v393 = vpop.f32.mrf.mxu0
  %v394 = vadd.f32 %v375, %v393
  %395 = vmatmul.bf16.gmra.mxu0 %v358
  %v396 = vpop.f32.mrf.mxu0
  %v397 = vadd.f32 %v378, %v396
  %v398 = vpop.f32.mrf.mxu0
  %v399 = vadd.f32 %v380, %v398
  %400 = vdwg.mxu0
  %v401 = vmax.f32 %v334, %v392
  %v402 = vmax.f32 %v335, %v394
  %v403 = vmax.f32 %v336, %v397
  %v404 = vmax.f32 %v337, %v399
  %v405 = vld [vmem:[%s2] sm:$0x1]
  %v407 = vperm.slane %v405, 0
  %v409 = vadd.f32 %v401, %v407
  %v410 = vadd.f32 %v402, %v407
  %v411 = vadd.f32 %v403, %v407
  %v412 = vadd.f32 %v404, %v407
  %v413 = vmax.f32 %v409, 0.0
  %v414 = vmax.f32 %v410, 0.0
  %v415 = vmax.f32 %v411, 0.0
  %v416 = vmax.f32 %v412, 0.0
  %vm417 = vcmask 162816
  %418 = vst.msk [vmem:[%s3] sm:$0xff] %vm417, %v413
  %419 = vst.msk [vmem:[%s3 + $0x8] sm:$0xff] %vm417, %v414
  %420 = vst.msk [vmem:[%s3 + $0x10] sm:$0xff] %vm417, %v415
  %421 = vst.msk [vmem:[%s3 + $0x18] sm:$0xff] %vm417, %v416
  // Predicated region
  $region14: #{mnist_net_forward.4} parent=0 // pred_check
    _
  $region15: #{mnist_net_forward.4} parent=0 // pred_check_branch
    %423 = sbr.rel (0) target = $region17
  $region16: #{mnist_net_forward.4} parent=0 // pred_region
    _
  $region17: #{mnist_net_forward.4} parent=0 // pred_fallthru
    _
  // Predicated region
  $region18: #{mnist_net_forward.4} parent=0 // pred_check
    _
  $region19: #{mnist_net_forward.4} parent=0 // pred_check_branch
    %425 = sbr.rel (0) target = $region21
  $region20: #{mnist_net_forward.4} parent=0 // pred_region
    _
  $region21: #{mnist_net_forward.4} parent=0 // pred_fallthru
    _

// kernel: mnist_net_forward.5
$region0: #{mnist_net_forward.5}
  #allocation0 [shape = 'u32[]', space=smem, size = 0x4, offset = 0x4, fixed_abs, tag = 'smem constant byte address 0x4 - core index']
  #allocation1 [shape = 'u32[72,128]{1,0:T(1,128)}', space=vmem, size = 0x9000, scoped, tag = 'internal scratch']
  %s0 = inlined_call_operand.vmem [shape: bf16[2,320], index: 0, kind: input, shape index: {}]
  %s1 = inlined_call_operand.vmem [shape: bf16[320,50], index: 1, kind: input, shape index: {}]
  %s2 = inlined_call_operand.vmem [shape: f32[1,50], index: 2, kind: input, shape index: {}]
  %s3 = inlined_call_operand.vmem [shape: bf16[50,10], index: 3, kind: input, shape index: {}]
  %s4 = inlined_call_operand.vmem [shape: f32[1,10], index: 4, kind: input, shape index: {}]
  %s5 = inlined_call_operand.hbm [shape: f32[2,10], index: 5, kind: output, shape index: {}]
  %s6 = sld [smem:[#allocation0]]
  $region30: #{mnist_net_forward.5} parent=0
    _
  %s8 = ssub.s32 1, %s6
  %s9 = scalar_select 0, %s8, %s6
  $region1: #{mnist_net_forward.5} parent=0
    #allocation2 [shape = 'u8[1024]{0}', space=vmem, size = 0x400, scoped, tag = 'output window, operand 0, single buffered']
    #allocation3 [shape = 's32[1]{0}', space=sflag, size = 0x4, scoped, tag = 'scoped memory for mnist_net_forward.5']
    %10 = vsyncpa [#allocation3], 0
    // Predicated region
    $region2: #{mnist_net_forward.5} parent=1 // pred_check
      _
    $region3: #{mnist_net_forward.5} parent=1 // pred_check_branch
      %12 = sbr.rel (0) target = $region5
    $region4: #{mnist_net_forward.5} parent=1 // pred_region
      _
    $region5: #{mnist_net_forward.5} parent=1 // pred_fallthru
      _
    // Predicated region
    $region6: #{mnist_net_forward.5} parent=1 // pred_check
      _
    $region7: #{mnist_net_forward.5} parent=1 // pred_check_branch
      %14 = sbr.rel (0) target = $region9
    $region8: #{mnist_net_forward.5} parent=1 // pred_region
      _
    $region9: #{mnist_net_forward.5} parent=1 // pred_fallthru
      _
    // Predicated region
    $region10: #{mnist_net_forward.5} parent=1 // pred_check
      _
    $region11: #{mnist_net_forward.5} parent=1 // pred_check_branch
      %16 = sbr.rel (0) target = $region13
    $region12: #{mnist_net_forward.5} parent=1 // pred_region
      _
    $region13: #{mnist_net_forward.5} parent=1 // pred_fallthru
      _
    // Predicated region
    $region14: #{mnist_net_forward.5} parent=1 // pred_check
      _
    $region15: #{mnist_net_forward.5} parent=1 // pred_check_branch
      %18 = sbr.rel (0) target = $region17
    $region16: #{mnist_net_forward.5} parent=1 // pred_region
      _
    $region17: #{mnist_net_forward.5} parent=1 // pred_fallthru
      _
    // Predicated region
    $region18: #{mnist_net_forward.5} parent=1 // pred_check
      _
    $region19: #{mnist_net_forward.5} parent=1 // pred_check_branch
      %20 = sbr.rel (0) target = $region21
    $region20: #{mnist_net_forward.5} parent=1 // pred_region
      _
    $region21: #{mnist_net_forward.5} parent=1 // pred_fallthru
      _
    %v22 = vld [vmem:[%s0] sm:$0x7]
    %v23 = vld [vmem:[%s1] sm:$0xf]
    %v24 = vld [vmem:[%s1 + $0x4] sm:$0xf]
    %v25 = vld [vmem:[%s1 + $0x8] sm:$0xf]
    %v26 = vld [vmem:[%s1 + $0xc] sm:$0xf]
    %v27 = vld [vmem:[%s1 + $0x10] sm:$0xf]
    %v28 = vld [vmem:[%s1 + $0x14] sm:$0xf]
    %v29 = vld [vmem:[%s1 + $0x18] sm:$0xf]
    %v30 = vld [vmem:[%s1 + $0x1c] sm:$0xf]
    %v31 = vld [vmem:[%s1 + $0x20] sm:$0xf]
    %v32 = vld [vmem:[%s1 + $0x24] sm:$0xf]
    %v33 = vld [vmem:[%s1 + $0x28] sm:$0xf]
    %v34 = vld [vmem:[%s1 + $0x2c] sm:$0xf]
    %v35 = vld [vmem:[%s1 + $0x30] sm:$0xf]
    %v36 = vld [vmem:[%s1 + $0x34] sm:$0xf]
    %v37 = vld [vmem:[%s1 + $0x38] sm:$0xf]
    %v38 = vld [vmem:[%s1 + $0x3c] sm:$0xf]
    %v39 = vld [vmem:[%s1 + $0x40] sm:$0xf]
    %v40 = vld [vmem:[%s1 + $0x44] sm:$0xf]
    %v41 = vld [vmem:[%s1 + $0x48] sm:$0xf]
    %v42 = vld [vmem:[%s1 + $0x4c] sm:$0xf]
    %v43 = vld [vmem:[%s1 + $0x50] sm:$0xf]
    %v44 = vld [vmem:[%s1 + $0x54] sm:$0xf]
    %v45 = vld [vmem:[%s1 + $0x58] sm:$0xf]
    %v46 = vld [vmem:[%s1 + $0x5c] sm:$0xf]
    %v47 = vld [vmem:[%s1 + $0x60] sm:$0xf]
    %v48 = vld [vmem:[%s1 + $0x64] sm:$0xf]
    %v49 = vld [vmem:[%s1 + $0x68] sm:$0xf]
    %v50 = vld [vmem:[%s1 + $0x6c] sm:$0xf]
    %v51 = vld [vmem:[%s1 + $0x70] sm:$0xf]
    %v52 = vld [vmem:[%s1 + $0x74] sm:$0xf]
    %v53 = vld [vmem:[%s1 + $0x78] sm:$0xf]
    %v54 = vld [vmem:[%s1 + $0x7c] sm:$0xf]
    %v55 = vld [vmem:[%s1 + $0x80] sm:$0xf]
    %v56 = vld [vmem:[%s1 + $0x84] sm:$0xf]
    %v57 = vld [vmem:[%s1 + $0x88] sm:$0xf]
    %v58 = vld [vmem:[%s1 + $0x8c] sm:$0xf]
    %v59 = vld [vmem:[%s1 + $0x90] sm:$0xf]
    %v60 = vld [vmem:[%s1 + $0x94] sm:$0xf]
    %v61 = vld [vmem:[%s1 + $0x98] sm:$0xf]
    %v62 = vld [vmem:[%s1 + $0x9c] sm:$0xf]
    %v63 = vld [vmem:[%s2] sm:$0x1]
    %v65 = vperm.slane %v63, 0
    %68 = vst [vmem:[#allocation1] ss:$9 sm:$0xff] %v22
    %v69 = vld [vmem:[#allocation1] sm:$0xff]
    %v70 = vld [vmem:[#allocation1 + $0x9] sm:$0xff]
    %v71 = vld [vmem:[#allocation1 + $0x12] sm:$0xff]
    %v114 = vunpack.c.l.b16 %v23
    %v115 = vunpack.c.l.b16 %v24
    %v116 = vunpack.c.l.b16 %v25
    %v117 = vunpack.c.l.b16 %v26
    %v118 = vunpack.c.l.b16 %v27
    %v119 = vunpack.c.l.b16 %v28
    %v120 = vunpack.c.l.b16 %v29
    %v121 = vunpack.c.l.b16 %v30
    %v122 = vunpack.c.l.b16 %v31
    %v123 = vunpack.c.l.b16 %v32
    %v124 = vunpack.c.l.b16 %v33
    %v125 = vunpack.c.l.b16 %v34
    %v126 = vunpack.c.l.b16 %v35
    %v127 = vunpack.c.l.b16 %v36
    %v128 = vunpack.c.l.b16 %v37
    %v129 = vunpack.c.l.b16 %v38
    %v130 = vunpack.c.l.b16 %v39
    %v131 = vunpack.c.l.b16 %v40
    %v132 = vunpack.c.l.b16 %v41
    %v133 = vunpack.c.l.b16 %v42
    %v134 = vunpack.c.l.b16 %v43
    %v135 = vunpack.c.l.b16 %v44
    %v136 = vunpack.c.l.b16 %v45
    %v137 = vunpack.c.l.b16 %v46
    %v138 = vunpack.c.l.b16 %v47
    %v139 = vunpack.c.l.b16 %v48
    %v140 = vunpack.c.l.b16 %v49
    %v141 = vunpack.c.l.b16 %v50
    %v142 = vunpack.c.l.b16 %v51
    %v143 = vunpack.c.l.b16 %v52
    %v144 = vunpack.c.l.b16 %v53
    %v145 = vunpack.c.l.b16 %v54
    %v146 = vunpack.c.l.b16 %v55
    %v147 = vunpack.c.l.b16 %v56
    %v148 = vunpack.c.l.b16 %v57
    %v149 = vunpack.c.l.b16 %v58
    %v150 = vunpack.c.l.b16 %v59
    %v151 = vunpack.c.l.b16 %v60
    %v152 = vunpack.c.l.b16 %v61
    %v153 = vunpack.c.l.b16 %v62
    %v154 = vpack.c.b16 %v115, %v114
    %v155 = vpack.c.b16 %v117, %v116
    %v156 = vpack.c.b16 %v119, %v118
    %v157 = vpack.c.b16 %v121, %v120
    %v158 = vpack.c.b16 %v123, %v122
    %v159 = vpack.c.b16 %v125, %v124
    %v160 = vpack.c.b16 %v127, %v126
    %v161 = vpack.c.b16 %v129, %v128
    %v162 = vpack.c.b16 %v131, %v130
    %v163 = vpack.c.b16 %v133, %v132
    %v164 = vpack.c.b16 %v135, %v134
    %v165 = vpack.c.b16 %v137, %v136
    %v166 = vpack.c.b16 %v139, %v138
    %v167 = vpack.c.b16 %v141, %v140
    %v168 = vpack.c.b16 %v143, %v142
    %v169 = vpack.c.b16 %v145, %v144
    %v170 = vpack.c.b16 %v147, %v146
    %v171 = vpack.c.b16 %v149, %v148
    %v172 = vpack.c.b16 %v151, %v150
    %v173 = vpack.c.b16 %v153, %v152
    %vm194 = vcmask 523264
    %v195 = vsel %vm194, %v71, 0
    %197 = vmatpush.bf16.msra.mxu0 %v161
    %198 = vmatpush.bf16.msra.mxu0 %v160
    %199 = vmatpush.bf16.msra.mxu0 %v159
    %200 = vmatpush.bf16.msra.mxu0 %v158
    %201 = vmatpush.bf16.msra.mxu0 %v157
    %202 = vmatpush.bf16.msra.mxu0 %v156
    %203 = vmatpush.bf16.msra.mxu0 %v155
    %204 = vmatpush.bf16.msra.mxu0 %v154
    %205 = vmatmul.bf16.gmra.mxu0 %v69
    %v206 = vpop.f32.mrf.mxu0
    %v207 = vadd.f32 %v65, %v206
    %v208 = vpop.f32.mrf.mxu0
    %209 = vdwg.mxu0
    %210 = vmatpush.bf16.msra.mxu0 %v169
    %211 = vmatpush.bf16.msra.mxu0 %v168
    %212 = vmatpush.bf16.msra.mxu0 %v167
    %213 = vmatpush.bf16.msra.mxu0 %v166
    %214 = vmatpush.bf16.msra.mxu0 %v165
    %215 = vmatpush.bf16.msra.mxu0 %v164
    %216 = vmatpush.bf16.msra.mxu0 %v163
    %217 = vmatpush.bf16.msra.mxu0 %v162
    %218 = vmatmul.bf16.gmra.mxu0 %v70
    %v219 = vpop.f32.mrf.mxu0
    %v220 = vadd.f32 %v207, %v219
    %v221 = vpop.f32.mrf.mxu0
    %222 = vdwg.mxu0
    %223 = vmatpush.bf16.msra.mxu0 0
    %224 = vmatpush.bf16.msra.mxu0 0
    %225 = vmatpush.bf16.msra.mxu0 0
    %226 = vmatpush.bf16.msra.mxu0 0
    %227 = vmatpush.bf16.msra.mxu0 %v173
    %228 = vmatpush.bf16.msra.mxu0 %v172
    %229 = vmatpush.bf16.msra.mxu0 %v171
    %230 = vmatpush.bf16.msra.mxu0 %v170
    %231 = vmatmul.bf16.gmra.mxu0 %v195
    %v232 = vpop.f32.mrf.mxu0
    %v233 = vadd.f32 %v220, %v232
    %v234 = vpop.f32.mrf.mxu0
    %235 = vdwg.mxu0
    %v236 = vmax.f32 %v233, 0.0
    %v237 = vpack.c.bf16 %v236, %v236
    %v238 = vld [vmem:[%s3] sm:$0xf]
    %v239 = vld [vmem:[%s3 + $0x4] sm:$0xf]
    %v240 = vld [vmem:[%s3 + $0x8] sm:$0xf]
    %v241 = vld [vmem:[%s3 + $0xc] sm:$0xf]
    %v242 = vld [vmem:[%s3 + $0x10] sm:$0xf]
    %v243 = vld [vmem:[%s3 + $0x14] sm:$0xf]
    %v244 = vld [vmem:[%s3 + $0x18] sm:$0x1]
    %v245 = vld [vmem:[%s4] sm:$0x1]
    %v247 = vperm.slane %v245, 0
    %v256 = vunpack.c.l.b16 %v238
    %v257 = vunpack.c.l.b16 %v239
    %v258 = vunpack.c.l.b16 %v240
    %v259 = vunpack.c.l.b16 %v241
    %v260 = vunpack.c.l.b16 %v242
    %v261 = vunpack.c.l.b16 %v243
    %v262 = vunpack.c.l.b16 %v244
    %v263 = vpack.c.b16 %v257, %v256
    %v264 = vpack.c.b16 %v259, %v258
    %v265 = vpack.c.b16 %v261, %v260
    %v266 = vpack.c.b16 %v262, %v262
    %vm270 = vcmask 408576
    %v272 = vsel %vm270, %v237, 0
    %vm274 = vcmask 1040384
    %v276 = vsel %vm274, %v266, 0
    %278 = vmatpush.bf16.msra.mxu0 0
    %279 = vmatpush.bf16.msra.mxu0 0
    %280 = vmatpush.bf16.msra.mxu0 0
    %281 = vmatpush.bf16.msra.mxu0 0
    %282 = vmatpush.bf16.msra.mxu0 %v276
    %283 = vmatpush.bf16.msra.mxu0 %v265
    %284 = vmatpush.bf16.msra.mxu0 %v264
    %285 = vmatpush.bf16.msra.mxu0 %v263
    %286 = vmatmul.bf16.gmra.mxu0 %v272
    %v287 = vpop.f32.mrf.mxu0
    %v288 = vadd.f32 %v247, %v287
    %v289 = vpop.f32.mrf.mxu0
    %290 = vdwg.mxu0
    %vm291 = vcmask 74752
    %v292 = vsel %vm291, %v288, -inf
    %293 = vmax.xlane.f32.xlu0 %v292
    %v294 = vpop.xlane.xlu0 %293
    %v295 = vsub.f32 %v288, %v294
    %v296 = vmul.f32 %v295, 1.442695
    %v297 = vpow.pop %v296
    %v298 = vsel %vm291, %v297, 0.0
    %299 = vadd.xlane.f32.xlu0 %v298
    %v300 = vpop.xlane.xlu0 %299
    %v301 = vlog2.pop %v300
    %v302 = vmul.f32 %v301, 0.6931472
    %v303 = vadd.f32 %v294, %v302
    %v304 = vsub.f32 %v288, %v303
    %305 = vst.msk [vmem:[#allocation2] sm:$0x3] %vm291, %v304
    // Predicated region
    $region22: #{mnist_net_forward.5} parent=1 // pred_check
      _
    $region23: #{mnist_net_forward.5} parent=1 // pred_check_branch
      %307 = sbr.rel (0) target = $region25
    $region24: #{mnist_net_forward.5} parent=1 // pred_region
      %309 = vsyncadd [#allocation3], 0
      %s311 = sshll.u32 [#allocation2], 4
      %s312 = int_to_ptr.vmem [resolvable:$true] %s311
      %s313 = sshll.u32 %s5, 4
      %s314 = int_to_ptr.hbm [resolvable:$true] %s313
      %316 = dma.vmem_to_hbm [thread:$0]  %s312, 32, %s314, [#allocation3]
    $region25: #{mnist_net_forward.5} parent=1 // pred_fallthru
      _
    // Predicated region
    $region26: #{mnist_net_forward.5} parent=1 // pred_check
      _
    $region27: #{mnist_net_forward.5} parent=1 // pred_check_branch
      %318 = sbr.rel (0) target = $region29
    $region28: #{mnist_net_forward.5} parent=1 // pred_region
      %320 = dma.done [#allocation3], 32
    $region29: #{mnist_net_forward.5} parent=1 // pred_fallthru
      _
    %321 = vsyncpa [#allocation3], 1

</llo_original>
